<compile_context>
chip_gen: v6e
topology: v6e:2x2x1
jax: 0.10.0
libtpu: 0.0.40
codegen_flags: <defaults>
</compile_context>

<pallas_src>
import math

import jax
import jax.numpy as jnp
from jax import lax
from jax.experimental import pallas as pl
from jax.experimental.pallas import tpu as pltpu


def _round_up(x, m):
    return (x + m - 1) // m * m


def _round_down(x, m):
    return (x // m) * m


# ---------------------------------------------------------------------------
# Kernel 1: bidirectional LSTM over one tile of (possibly padded) utterances.
# Equivalent to EncoderRNN(..., bidirectional=True)[1]: concat of the final
# forward hidden (at t = len-1) and final backward hidden (after consuming
# token 0), with padded positions masked out (pack_padded_sequence semantics).
# ---------------------------------------------------------------------------
def bilstm_kernel(tmax_ref, x_ref, len_ref, w_ih_ref, wf_hh_ref, bf_ref,
                  wb_hh_ref, bb_ref, out_ref, gx_scr):
    L, tm, E = x_ref.shape
    Hp = wf_hh_ref.shape[0]            # 128-padded per-direction hidden
    G = 4 * Hp                          # per-direction gate width

    # ---- hoisted, fused input projection: ONE big MXU matmul ---------------
    # w_ih = [wf_ih | wb_ih] -> (E, 8*Hp); scratch holds both directions.
    x2d = x_ref[...].reshape(L * tm, E)                               # bf16
    gx = jnp.dot(x2d, w_ih_ref[...], preferred_element_type=jnp.float32)
    gx_scr[...] = gx.reshape(L, tm, 2 * G).astype(gx_scr.dtype)

    lens = len_ref[...]                                               # (tm, 1)
    wf_hh = wf_hh_ref[...]                                            # bf16
    wb_hh = wb_hh_ref[...]
    bf = bf_ref[...]                                                  # (1, G) f32
    bb = bb_ref[...]
    t_max = tmax_ref[pl.program_id(0)]   # scalar-prefetched per-tile max length

    def cell(gx_t, h, c, w_hh, b):
        # gate math in f32 (v5e has no bf16 VPU/EUP); MXU operands bf16.
        gates = (gx_t.astype(jnp.float32) + b
                 + jnp.dot(h.astype(jnp.bfloat16), w_hh,
                           preferred_element_type=jnp.float32))
        i = jax.nn.sigmoid(gates[:, 0 * Hp:1 * Hp])
        f = jax.nn.sigmoid(gates[:, 1 * Hp:2 * Hp])
        g = jnp.tanh(gates[:, 2 * Hp:3 * Hp])
        o = jax.nn.sigmoid(gates[:, 3 * Hp:4 * Hp])
        c_new = f * c + i * g
        return o * jnp.tanh(c_new), c_new

    def step(t, carry):
        hf, cf, hb, cb = carry
        # forward direction: t = 0 .. t_max-1, freeze state past utter_len
        gx_f = gx_scr[t]
        hf_n, cf_n = cell(gx_f[:, :G], hf, cf, wf_hh, bf)
        m_f = lens > t
        hf = jnp.where(m_f, hf_n, hf)
        cf = jnp.where(m_f, cf_n, cf)
        # backward direction: tb = t_max-1 .. 0, skip padded positions
        tb = t_max - 1 - t
        gx_b = gx_scr[tb]
        hb_n, cb_n = cell(gx_b[:, G:], hb, cb, wb_hh, bb)
        m_b = lens > tb
        hb = jnp.where(m_b, hb_n, hb)
        cb = jnp.where(m_b, cb_n, cb)
        return hf, cf, hb, cb

    z = jnp.zeros((tm, Hp), jnp.float32)
    # Dynamic trip count (per-tile max length) -> padded timesteps skipped.
    hf, _cf, hb, _cb = lax.fori_loop(0, t_max, step, (z, z, z, z))

    # lane-dense stores (Hp is a multiple of 128); no concatenate needed
    out_ref[:, :Hp] = hf
    out_ref[:, Hp:] = hb


# ---------------------------------------------------------------------------
# Kernel 2: clf_score  ->  bmm(cands, linear_h(utter).unsqueeze(-1)).squeeze(-1)
# Projection on the MXU; the batched matvec as broadcast-mul + lane reduce.
# ---------------------------------------------------------------------------
def clf_score_kernel(last_ref, wh_t_ref, cands_ref, out_ref):
    proj = jnp.dot(last_ref[...], wh_t_ref[...],
                   preferred_element_type=jnp.float32)                # (B, Hpad)
    out_ref[...] = jnp.sum(cands_ref[...] * proj[:, None, :], axis=-1)  # (B, C)


# ---------------------------------------------------------------------------
# VMEM budgeting helpers
# ---------------------------------------------------------------------------
def _vmem_bytes(L, tm, Ep, Hp, gate_itemsize):
    G = 4 * Hp
    scratch = L * tm * 2 * G * gate_itemsize             # fused gate scratch
    x_blk = 2 * L * tm * Ep * 2                          # bf16, double-buffered
    lens_blk = 2 * tm * 4
    out_blk = 2 * tm * 2 * Hp * 4
    weights = 2 * (Ep * 2 * G * 2 + 2 * Hp * G * 2 + 2 * G * 4)
    return scratch + x_blk + lens_blk + out_blk + weights


def _choose_tile_m(tile_m, M, L, Ep, Hp, gate_itemsize, budget):
    tm = max(8, min(_round_up(tile_m, 8), _round_up(M, 8)))
    while tm > 8 and _vmem_bytes(L, tm, Ep, Hp, gate_itemsize) > budget:
        tm = max(8, _round_down(tm // 2, 8))
    return tm


# ---------------------------------------------------------------------------
# Wrappers
# ---------------------------------------------------------------------------
_VMEM = pl.BlockSpec(memory_space=pltpu.MemorySpace.VMEM)


def encode_utterances(tokens, lengths, pp, *, tile_m=128,
                      gate_dtype=jnp.float32, vmem_budget_bytes=40 * 2**20):
    """tokens: (M, L) int32, lengths: (M,) -> (M, 2*Hp) float32 (padded layout)."""
    M, L = tokens.shape
    Ep = pp['emb'].shape[1]            # 128-padded embedding width
    Hp = pp['wf_hh'].shape[0]
    G = 4 * Hp
    G8 = 2 * G

    gate_itemsize = jnp.dtype(gate_dtype).itemsize
    tile_m = _choose_tile_m(tile_m, M, L, Ep, Hp, gate_itemsize,
                            vmem_budget_bytes)

    # length bucketing: sort utterances by length (desc) so every M-tile is
    # roughly length-homogeneous and the per-tile max length is tight.
    lengths = lengths.astype(jnp.int32)
    order = jnp.argsort(-lengths)
    inv = jnp.argsort(order)
    tokens = tokens[order]
    lengths = lengths[order]

    M_pad = _round_up(max(M, tile_m), tile_m)
    if M_pad // tile_m > 1:            # even grid so v7x's 2 TCs stay balanced
        M_pad = _round_up(M_pad, 2 * tile_m)
    num_tiles = M_pad // tile_m

    tokens = jnp.pad(tokens, ((0, M_pad - M), (0, 0)))
    lens_full = jnp.pad(lengths, (0, M_pad - M))
    lens = lens_full.reshape(M_pad, 1)
    tile_max = lens_full.reshape(num_tiles, tile_m).max(axis=1)       # (num_tiles,)

    # gather embeddings directly time-major (L, M_pad, Ep) in bf16 (no big
    # activation transpose: only the int32 token ids are transposed).
    # TODO(synk): fuse this gather into the kernel (scalar-prefetched token ids
    # + in-kernel DMA) if xprof shows the embedded activations are HBM-bound.
    x = pp['emb'][tokens.T]

    est = _vmem_bytes(L, tile_m, Ep, Hp, gate_itemsize)
    vmem_limit = int(min(max(est * 3 // 2, 32 * 2**20), 96 * 2**20))

    out = pl.pallas_call(
        bilstm_kernel,
        out_shape=jax.ShapeDtypeStruct((M_pad, 2 * Hp), jnp.float32),
        grid_spec=pltpu.PrefetchScalarGridSpec(
            num_scalar_prefetch=1,                 # per-tile max utter length
            grid=(num_tiles,),
            in_specs=[
                pl.BlockSpec((L, tile_m, Ep), lambda m, tmax: (0, m, 0)),  # x
                pl.BlockSpec((tile_m, 1), lambda m, tmax: (m, 0)),         # lens
                # weights/biases: constant index_map -> VMEM-resident.
                # TODO(synk): pipeline_mode=pl.Buffered(1) here would skip
                # their double-buffering and reclaim a little VMEM on v7x.
                pl.BlockSpec((Ep, G8), lambda m, tmax: (0, 0)),            # w_ih (fwd|bwd)
                pl.BlockSpec((Hp, G), lambda m, tmax: (0, 0)),             # wf_hh
                pl.BlockSpec((1, G), lambda m, tmax: (0, 0)),              # bf
                pl.BlockSpec((Hp, G), lambda m, tmax: (0, 0)),             # wb_hh
                pl.BlockSpec((1, G), lambda m, tmax: (0, 0)),              # bb
            ],
            out_specs=pl.BlockSpec((tile_m, 2 * Hp), lambda m, tmax: (m, 0)),
            scratch_shapes=[pltpu.VMEM((L, tile_m, G8), gate_dtype)],
        ),
        compiler_params=pltpu.CompilerParams(
            dimension_semantics=("parallel",),
            vmem_limit_bytes=vmem_limit),
    )(tile_max, x, lens, pp['w_ih'], pp['wf_hh'], pp['bf'],
      pp['wb_hh'], pp['bb'])
    return out[:M][inv]                 # un-sort back to original order


def bilstm_forward(pp, ctx, ctx_utter_len, ctx_turns_num,
                   cands, cands_utter_len, *, tile_m=128,
                   gate_dtype=jnp.float32):
    B, T, L = ctx.shape
    _, C, Lc = cands.shape
    Hp = pp['wf_hh'].shape[0]
    Lmax = max(L, Lc)

    # merge ctx and cands utterances into ONE encoder launch (weights DMA'd once)
    ctx_tok = jnp.pad(ctx.reshape(B * T, L), ((0, 0), (0, Lmax - L)))
    cand_tok = jnp.pad(cands.reshape(B * C, Lc), ((0, 0), (0, Lmax - Lc)))
    tokens = jnp.concatenate([ctx_tok, cand_tok], axis=0)
    lengths = jnp.concatenate([ctx_utter_len.reshape(-1),
                               cands_utter_len.reshape(-1)], axis=0)

    enc = encode_utterances(tokens, lengths, pp, tile_m=tile_m,
                            gate_dtype=gate_dtype)                    # (B*T+B*C, 2Hp)
    ctx_vec = enc[:B * T].reshape(B, T, 2 * Hp)
    cands_vec = enc[B * T:].reshape(B, C, 2 * Hp)

    # gather last turn per batch element (glue; matches ctx_vec.gather(1, ...))
    last_o = ctx_vec[jnp.arange(B), ctx_turns_num - 1]                # (B, 2Hp)

    # (B, C) output last-dim < 128 -> masked store; tiny vs. the encoder, OK.
    score = pl.pallas_call(
        clf_score_kernel,
        out_shape=jax.ShapeDtypeStruct((B, C), jnp.float32),
        in_specs=[_VMEM] * 3,
        out_specs=_VMEM,
    )(last_o.astype(jnp.bfloat16), pp['wh_t'], cands_vec)
    return score                                                       # (B, C)


# ---------------------------------------------------------------------------
# Parameters: logical (PyTorch-shaped) init + 128-lane padded / bf16 prep.
# Padded hidden columns have zero weights & biases -> they stay exactly zero
# through the recurrence and contribute nothing to the final score.
# ---------------------------------------------------------------------------
def init_params(key, vocab_size, word_emb_size, hidden_size):
    assert hidden_size % 2 == 0
    H2 = hidden_size // 2
    ks = jax.random.split(key, 8)
    bound = 1.0 / math.sqrt(H2)

    def u(k, shape):
        return jax.random.uniform(k, shape, jnp.float32, -bound, bound)

    return dict(
        emb=jax.random.normal(ks[0], (vocab_size, word_emb_size), jnp.float32),
        wf_ih=u(ks[1], (word_emb_size, 4 * H2)),
        wf_hh=u(ks[2], (H2, 4 * H2)),
        bf=u(ks[3], (4 * H2,)),          # b_ih + b_hh folded together
        wb_ih=u(ks[4], (word_emb_size, 4 * H2)),
        wb_hh=u(ks[5], (H2, 4 * H2)),
        bb=u(ks[6], (4 * H2,)),
        wh_t=u(ks[7], (hidden_size, hidden_size)),   # transposed linear_h weight
    )


def pad_params(p, lane=128):
    H2 = p['wf_hh'].shape[0]
    E = p['wf_ih'].shape[0]
    Hp = _round_up(H2, lane)
    Ep = _round_up(E, lane)

    def gate_pad(w):                       # (..., 4*H2) -> (..., 4*Hp) per-gate
        parts = []
        for k in range(4):
            blk = w[..., k * H2:(k + 1) * H2]
            pw = [(0, 0)] * (w.ndim - 1) + [(0, Hp - H2)]
            parts.append(jnp.pad(blk, pw))
        return jnp.concatenate(parts, axis=-1)

    def hid_pad(a, axis):                  # [hf(H2)|hb(H2)] -> [hf(Hp)|hb(Hp)]
        hf = lax.slice_in_dim(a, 0, H2, axis=axis)
        hb = lax.slice_in_dim(a, H2, 2 * H2, axis=axis)
        pw = [(0, 0)] * a.ndim
        pw[axis] = (0, Hp - H2)
        return jnp.concatenate([jnp.pad(hf, pw), jnp.pad(hb, pw)], axis=axis)

    def k_pad(w):                          # pad embedding (K) dim E -> Ep
        return jnp.pad(w, ((0, Ep - E), (0, 0)))

    def hh_pad(w):                         # (H2, 4*H2) -> (Hp, 4*Hp)
        return gate_pad(jnp.pad(w, ((0, Hp - H2), (0, 0))))

    # fused input projection weight: [fwd gates | bwd gates] -> (Ep, 8*Hp)
    w_ih = jnp.concatenate([gate_pad(k_pad(p['wf_ih'])),
                            gate_pad(k_pad(p['wb_ih']))], axis=-1)

    return dict(
        emb=jnp.pad(p['emb'], ((0, 0), (0, Ep - E))).astype(jnp.bfloat16),
        w_ih=w_ih.astype(jnp.bfloat16),
        wf_hh=hh_pad(p['wf_hh']).astype(jnp.bfloat16),
        bf=gate_pad(p['bf'].reshape(1, -1)).astype(jnp.float32),
        wb_hh=hh_pad(p['wb_hh']).astype(jnp.bfloat16),
        bb=gate_pad(p['bb'].reshape(1, -1)).astype(jnp.float32),
        wh_t=hid_pad(hid_pad(p['wh_t'], 0), 1).astype(jnp.bfloat16),
    )


# ---------------------------------------------------------------------------
# Pure-JAX reference (unpadded, mirrors the kernel's bf16-operand matmuls)
# ---------------------------------------------------------------------------
def reference_forward(p, ctx, ctx_utter_len, ctx_turns_num,
                      cands, cands_utter_len):
    H2 = p['wf_hh'].shape[0]

    def mm(a, b):
        return jnp.dot(a.astype(jnp.bfloat16), b.astype(jnp.bfloat16),
                       preferred_element_type=jnp.float32)

    def cell(x_t, h, c, w_ih, w_hh, b):
        g = mm(x_t, w_ih) + mm(h, w_hh) + b
        i = jax.nn.sigmoid(g[:, :H2]); f = jax.nn.sigmoid(g[:, H2:2 * H2])
        gg = jnp.tanh(g[:, 2 * H2:3 * H2]); o = jax.nn.sigmoid(g[:, 3 * H2:])
        c_n = f * c + i * gg
        return o * jnp.tanh(c_n), c_n

    def encode(tokens, lengths):
        M, L = tokens.shape
        x = p['emb'][tokens]
        lens = lengths.reshape(M, 1)
        z = jnp.zeros((M, H2), jnp.float32)
        hf, cf, hb, cb = z, z, z, z
        for t in range(L):
            hf_n, cf_n = cell(x[:, t], hf, cf, p['wf_ih'], p['wf_hh'], p['bf'])
            m = lens > t
            hf = jnp.where(m, hf_n, hf); cf = jnp.where(m, cf_n, cf)
            tb = L - 1 - t
            hb_n, cb_n = cell(x[:, tb], hb, cb, p['wb_ih'], p['wb_hh'], p['bb'])
            m = lens > tb
            hb = jnp.where(m, hb_n, hb); cb = jnp.where(m, cb_n, cb)
        return jnp.concatenate([hf, hb], -1)

    B, T, L = ctx.shape
    _, C, Lc = cands.shape
    H = 2 * H2
    ctx_vec = encode(ctx.reshape(B * T, L),
                     ctx_utter_len.reshape(-1)).reshape(B, T, H)
    cands_vec = encode(cands.reshape(B * C, Lc),
                       cands_utter_len.reshape(-1)).reshape(B, C, H)
    last_o = ctx_vec[jnp.arange(B), ctx_turns_num - 1]
    proj = mm(last_o, p['wh_t'])
    return jnp.einsum('bch,bh->bc', cands_vec, proj)


if __name__ == "__main__":
    key = jax.random.PRNGKey(0)
    vocab_size, word_emb_size, hidden_size = 32, 16, 32
    B, T, C, L = 2, 3, 4, 8

    kp, kc, kd, kl1, kl2, kt = jax.random.split(key, 6)
    params = init_params(kp, vocab_size, word_emb_size, hidden_size)
    padded = pad_params(params)

    ctx = jax.random.randint(kc, (B, T, L), 0, vocab_size)           # token ids
    cands = jax.random.randint(kd, (B, C, L), 0, vocab_size)
    ctx_utter_len = jax.random.randint(kl1, (B, T), 1, L + 1)
    cands_utter_len = jax.random.randint(kl2, (B, C), 1, L + 1)
    ctx_turns_num = jax.random.randint(kt, (B,), 1, T + 1)

    score = bilstm_forward(padded, ctx, ctx_utter_len, ctx_turns_num,
                           cands, cands_utter_len)
    score = jax.block_until_ready(score)

    ref = reference_forward(params, ctx, ctx_utter_len, ctx_turns_num,
                            cands, cands_utter_len)
    assert score.shape == (B, C)
    assert jnp.allclose(score, ref, atol=1e-2, rtol=1e-2), (score, ref)
    print("KERNEL_OK")
</pallas_src>

<mosaic_0001>
module attributes {stable_mosaic.version = 11 : i64} {
  func.func @bilstm_kernel(%arg0: i32, %arg1: memref<1xi32, #tpu.memory_space<smem>>, %arg2: memref<8x16x128xbf16, #tpu.memory_space<vmem>>, %arg3: memref<16x1xi32, #tpu.memory_space<vmem>>, %arg4: memref<128x1024xbf16, #tpu.memory_space<vmem>>, %arg5: memref<128x512xbf16, #tpu.memory_space<vmem>>, %arg6: memref<1x512xf32, #tpu.memory_space<vmem>>, %arg7: memref<128x512xbf16, #tpu.memory_space<vmem>>, %arg8: memref<1x512xf32, #tpu.memory_space<vmem>>, %arg9: memref<16x256xf32, #tpu.memory_space<vmem>>, %arg10: memref<8x16x1024xf32, #tpu.memory_space<vmem>>) attributes {dimension_semantics = [#tpu.dimension_semantics<parallel>], iteration_bounds = array<i64: 1>, scalar_prefetch = 1 : i64, scratch_operands = 1 : i64, tpu.core_type = #tpu.core_type<tc>, window_params = [{transform_indices = @transform_0, window_bounds = array<i64: 8, 16, 128>}, {transform_indices = @transform_1, window_bounds = array<i64: 16, 1>}, {pipeline_mode = #tpu.pipeline_mode<synchronous>, transform_indices = @transform_2, window_bounds = array<i64: 128, 1024>}, {pipeline_mode = #tpu.pipeline_mode<synchronous>, transform_indices = @transform_3, window_bounds = array<i64: 128, 512>}, {pipeline_mode = #tpu.pipeline_mode<synchronous>, transform_indices = @transform_4, window_bounds = array<i64: 1, 512>}, {pipeline_mode = #tpu.pipeline_mode<synchronous>, transform_indices = @transform_5, window_bounds = array<i64: 128, 512>}, {pipeline_mode = #tpu.pipeline_mode<synchronous>, transform_indices = @transform_6, window_bounds = array<i64: 1, 512>}, {transform_indices = @transform_7, window_bounds = array<i64: 16, 256>}]} {
    %c0 = arith.constant 0 : index
    %c0_0 = arith.constant 0 : index
    %c0_1 = arith.constant 0 : index
    %0 = vector.load %arg2[%c0, %c0_0, %c0_1] : memref<8x16x128xbf16, #tpu.memory_space<vmem>>, vector<8x16x128xbf16>
    %1 = vector.shape_cast %0 : vector<8x16x128xbf16> to vector<128x128xbf16>
    %c0_2 = arith.constant 0 : index
    %c0_3 = arith.constant 0 : index
    %2 = vector.load %arg4[%c0_2, %c0_3] : memref<128x1024xbf16, #tpu.memory_space<vmem>>, vector<128x1024xbf16>
    %cst = arith.constant dense<0.000000e+00> : vector<128x1024xf32>
    %3 = tpu.matmul %1, %2, %cst {dimension_numbers = #tpu.dot_dimension_numbers<[1], [0], [0], [1], [0, 0, 1, 1], [], []>} : vector<128x128xbf16>, vector<128x1024xbf16>, vector<128x1024xf32> -> vector<128x1024xf32>
    %4 = vector.shape_cast %3 : vector<128x1024xf32> to vector<8x16x1024xf32>
    %c0_4 = arith.constant 0 : index
    %c0_5 = arith.constant 0 : index
    %c0_6 = arith.constant 0 : index
    %5 = vector.load %arg10[%c0_4, %c0_5, %c0_6] : memref<8x16x1024xf32, #tpu.memory_space<vmem>>, vector<8x16x1024xf32>
    tpu.vector_store %arg10[%c0_4, %c0_5, %c0_6], %4 {strides = array<i32>} : memref<8x16x1024xf32, #tpu.memory_space<vmem>>, vector<8x16x1024xf32>,
    %c0_7 = arith.constant 0 : index
    %c0_8 = arith.constant 0 : index
    %6 = vector.load %arg3[%c0_7, %c0_8] : memref<16x1xi32, #tpu.memory_space<vmem>>, vector<16x1xi32>
    %c0_9 = arith.constant 0 : index
    %c0_10 = arith.constant 0 : index
    %7 = vector.load %arg5[%c0_9, %c0_10] : memref<128x512xbf16, #tpu.memory_space<vmem>>, vector<128x512xbf16>
    %c0_11 = arith.constant 0 : index
    %c0_12 = arith.constant 0 : index
    %8 = vector.load %arg7[%c0_11, %c0_12] : memref<128x512xbf16, #tpu.memory_space<vmem>>, vector<128x512xbf16>
    %c0_13 = arith.constant 0 : index
    %c0_14 = arith.constant 0 : index
    %9 = vector.load %arg6[%c0_13, %c0_14] : memref<1x512xf32, #tpu.memory_space<vmem>>, vector<1x512xf32>
    %c0_15 = arith.constant 0 : index
    %c0_16 = arith.constant 0 : index
    %10 = vector.load %arg8[%c0_15, %c0_16] : memref<1x512xf32, #tpu.memory_space<vmem>>, vector<1x512xf32>
    %11 = arith.index_cast %arg0 : i32 to index
    %12 = memref.load %arg1[%11] : memref<1xi32, #tpu.memory_space<smem>>
    %cst_17 = arith.constant 0.000000e+00 : f32
    %13 = vector.broadcast %cst_17 : f32 to vector<16x128xf32>
    %c0_i32 = arith.constant 0 : i32
    %14 = arith.subi %12, %c0_i32 : i32
    %15 = arith.addi %c0_i32, %14 : i32
    %c1_i32 = arith.constant 1 : i32
    %16:4 = scf.for %arg11 = %c0_i32 to %15 step %c1_i32 iter_args(%arg12 = %13, %arg13 = %13, %arg14 = %13, %arg15 = %13) -> (vector<16x128xf32>, vector<16x128xf32>, vector<16x128xf32>, vector<16x128xf32>)  : i32 {
      %19 = arith.index_cast %arg11 : i32 to index
      %c0_21 = arith.constant 0 : index
      %c0_22 = arith.constant 0 : index
      %20 = vector.load %arg10[%19, %c0_21, %c0_22] : memref<8x16x1024xf32, #tpu.memory_space<vmem>>, vector<1x16x1024xf32>
      %21 = vector.shape_cast %20 : vector<1x16x1024xf32> to vector<16x1024xf32>
      %22 = vector.extract_strided_slice %21 {offsets = [0, 0], sizes = [16, 512], strides = [1, 1]} : vector<16x1024xf32> to vector<16x512xf32>
      %23 = vector.broadcast %9 : vector<1x512xf32> to vector<16x512xf32>
      %24 = arith.addf %22, %23 : vector<16x512xf32>
      %25 = arith.truncf %arg12 : vector<16x128xf32> to vector<16x128xbf16>
      %cst_23 = arith.constant dense<0.000000e+00> : vector<16x512xf32>
      %26 = tpu.matmul %25, %7, %cst_23 {dimension_numbers = #tpu.dot_dimension_numbers<[1], [0], [0], [1], [0, 0, 1, 1], [], []>} : vector<16x128xbf16>, vector<128x512xbf16>, vector<16x512xf32> -> vector<16x512xf32>
      %27 = arith.addf %24, %26 : vector<16x512xf32>
      %28 = vector.extract_strided_slice %27 {offsets = [0, 0], sizes = [16, 128], strides = [1, 1]} : vector<16x512xf32> to vector<16x128xf32>
      %29 = arith.negf %28 : vector<16x128xf32>
      %30 = math.exp %29 : vector<16x128xf32>
      %cst_24 = arith.constant 1.000000e+00 : f32
      %31 = vector.broadcast %cst_24 : f32 to vector<16x128xf32>
      %32 = arith.addf %31, %30 : vector<16x128xf32>
      %33 = arith.divf %31, %32 : vector<16x128xf32>
      %34 = vector.extract_strided_slice %27 {offsets = [0, 128], sizes = [16, 128], strides = [1, 1]} : vector<16x512xf32> to vector<16x128xf32>
      %35 = arith.negf %34 : vector<16x128xf32>
      %36 = math.exp %35 : vector<16x128xf32>
      %cst_25 = arith.constant 1.000000e+00 : f32
      %37 = vector.broadcast %cst_25 : f32 to vector<16x128xf32>
      %38 = arith.addf %37, %36 : vector<16x128xf32>
      %39 = arith.divf %37, %38 : vector<16x128xf32>
      %40 = vector.extract_strided_slice %27 {offsets = [0, 256], sizes = [16, 128], strides = [1, 1]} : vector<16x512xf32> to vector<16x128xf32>
      %41 = math.tanh %40 : vector<16x128xf32>
      %42 = vector.extract_strided_slice %27 {offsets = [0, 384], sizes = [16, 128], strides = [1, 1]} : vector<16x512xf32> to vector<16x128xf32>
      %43 = arith.negf %42 : vector<16x128xf32>
      %44 = math.exp %43 : vector<16x128xf32>
      %cst_26 = arith.constant 1.000000e+00 : f32
      %45 = vector.broadcast %cst_26 : f32 to vector<16x128xf32>
      %46 = arith.addf %45, %44 : vector<16x128xf32>
      %47 = arith.divf %45, %46 : vector<16x128xf32>
      %48 = arith.mulf %39, %arg13 : vector<16x128xf32>
      %49 = arith.mulf %33, %41 : vector<16x128xf32>
      %50 = arith.addf %48, %49 : vector<16x128xf32>
      %51 = math.tanh %50 : vector<16x128xf32>
      %52 = arith.mulf %47, %51 : vector<16x128xf32>
      %53 = vector.broadcast %arg11 : i32 to vector<16x1xi32>
      %54 = arith.cmpi sgt, %6, %53 : vector<16x1xi32>
      %55 = vector.shape_cast %54 : vector<16x1xi1> to vector<16x1xi1>
      %56 = vector.broadcast %55 : vector<16x1xi1> to vector<16x128xi1>
      %57 = arith.select %56, %52, %arg12 : vector<16x128xi1>, vector<16x128xf32>
      %58 = vector.shape_cast %54 : vector<16x1xi1> to vector<16x1xi1>
      %59 = vector.broadcast %58 : vector<16x1xi1> to vector<16x128xi1>
      %60 = arith.select %59, %50, %arg13 : vector<16x128xi1>, vector<16x128xf32>
      %c1_i32_27 = arith.constant 1 : i32
      %61 = arith.subi %12, %c1_i32_27 : i32
      %62 = arith.subi %61, %arg11 : i32
      %63 = arith.index_cast %62 : i32 to index
      %c0_28 = arith.constant 0 : index
      %c0_29 = arith.constant 0 : index
      %64 = vector.load %arg10[%63, %c0_28, %c0_29] : memref<8x16x1024xf32, #tpu.memory_space<vmem>>, vector<1x16x1024xf32>
      %65 = vector.shape_cast %64 : vector<1x16x1024xf32> to vector<16x1024xf32>
      %66 = vector.extract_strided_slice %65 {offsets = [0, 512], sizes = [16, 512], strides = [1, 1]} : vector<16x1024xf32> to vector<16x512xf32>
      %67 = vector.broadcast %10 : vector<1x512xf32> to vector<16x512xf32>
      %68 = arith.addf %66, %67 : vector<16x512xf32>
      %69 = arith.truncf %arg14 : vector<16x128xf32> to vector<16x128xbf16>
      %cst_30 = arith.constant dense<0.000000e+00> : vector<16x512xf32>
      %70 = tpu.matmul %69, %8, %cst_30 {dimension_numbers = #tpu.dot_dimension_numbers<[1], [0], [0], [1], [0, 0, 1, 1], [], []>} : vector<16x128xbf16>, vector<128x512xbf16>, vector<16x512xf32> -> vector<16x512xf32>
      %71 = arith.addf %68, %70 : vector<16x512xf32>
      %72 = vector.extract_strided_slice %71 {offsets = [0, 0], sizes = [16, 128], strides = [1, 1]} : vector<16x512xf32> to vector<16x128xf32>
      %73 = arith.negf %72 : vector<16x128xf32>
      %74 = math.exp %73 : vector<16x128xf32>
      %cst_31 = arith.constant 1.000000e+00 : f32
      %75 = vector.broadcast %cst_31 : f32 to vector<16x128xf32>
      %76 = arith.addf %75, %74 : vector<16x128xf32>
      %77 = arith.divf %75, %76 : vector<16x128xf32>
      %78 = vector.extract_strided_slice %71 {offsets = [0, 128], sizes = [16, 128], strides = [1, 1]} : vector<16x512xf32> to vector<16x128xf32>
      %79 = arith.negf %78 : vector<16x128xf32>
      %80 = math.exp %79 : vector<16x128xf32>
      %cst_32 = arith.constant 1.000000e+00 : f32
      %81 = vector.broadcast %cst_32 : f32 to vector<16x128xf32>
      %82 = arith.addf %81, %80 : vector<16x128xf32>
      %83 = arith.divf %81, %82 : vector<16x128xf32>
      %84 = vector.extract_strided_slice %71 {offsets = [0, 256], sizes = [16, 128], strides = [1, 1]} : vector<16x512xf32> to vector<16x128xf32>
      %85 = math.tanh %84 : vector<16x128xf32>
      %86 = vector.extract_strided_slice %71 {offsets = [0, 384], sizes = [16, 128], strides = [1, 1]} : vector<16x512xf32> to vector<16x128xf32>
      %87 = arith.negf %86 : vector<16x128xf32>
      %88 = math.exp %87 : vector<16x128xf32>
      %cst_33 = arith.constant 1.000000e+00 : f32
      %89 = vector.broadcast %cst_33 : f32 to vector<16x128xf32>
      %90 = arith.addf %89, %88 : vector<16x128xf32>
      %91 = arith.divf %89, %90 : vector<16x128xf32>
      %92 = arith.mulf %83, %arg15 : vector<16x128xf32>
      %93 = arith.mulf %77, %85 : vector<16x128xf32>
      %94 = arith.addf %92, %93 : vector<16x128xf32>
      %95 = math.tanh %94 : vector<16x128xf32>
      %96 = arith.mulf %91, %95 : vector<16x128xf32>
      %97 = vector.broadcast %62 : i32 to vector<16x1xi32>
      %98 = arith.cmpi sgt, %6, %97 : vector<16x1xi32>
      %99 = vector.shape_cast %98 : vector<16x1xi1> to vector<16x1xi1>
      %100 = vector.broadcast %99 : vector<16x1xi1> to vector<16x128xi1>
      %101 = arith.select %100, %96, %arg14 : vector<16x128xi1>, vector<16x128xf32>
      %102 = vector.shape_cast %98 : vector<16x1xi1> to vector<16x1xi1>
      %103 = vector.broadcast %102 : vector<16x1xi1> to vector<16x128xi1>
      %104 = arith.select %103, %94, %arg15 : vector<16x128xi1>, vector<16x128xf32>
      scf.yield %57, %60, %101, %104 : vector<16x128xf32>, vector<16x128xf32>, vector<16x128xf32>, vector<16x128xf32>
    }
    %c0_18 = arith.constant 0 : index
    %c0_19 = arith.constant 0 : index
    %17 = vector.load %arg9[%c0_18, %c0_19] : memref<16x256xf32, #tpu.memory_space<vmem>>, vector<16x128xf32>
    tpu.vector_store %arg9[%c0_18, %c0_19], %16#0 {strides = array<i32>} : memref<16x256xf32, #tpu.memory_space<vmem>>, vector<16x128xf32>,
    %c0_20 = arith.constant 0 : index
    %c128 = arith.constant 128 : index
    %18 = vector.load %arg9[%c0_20, %c128] : memref<16x256xf32, #tpu.memory_space<vmem>>, vector<16x128xf32>
    tpu.vector_store %arg9[%c0_20, %c128], %16#2 {strides = array<i32>} : memref<16x256xf32, #tpu.memory_space<vmem>>, vector<16x128xf32>,
    return
  }
  func.func @transform_0(%arg0: i32, %arg1: memref<1xi32, #tpu.memory_space<smem>>) -> (i32, i32, i32) {
    %c0_i32 = arith.constant 0 : i32
    %c0_i32_0 = arith.constant 0 : i32
    %c0_i32_1 = arith.constant 0 : i32
    return %c0_i32, %arg0, %c0_i32_0 : i32, i32, i32
  }
  func.func @transform_1(%arg0: i32, %arg1: memref<1xi32, #tpu.memory_space<smem>>) -> (i32, i32) {
    %c0_i32 = arith.constant 0 : i32
    %c0_i32_0 = arith.constant 0 : i32
    return %arg0, %c0_i32 : i32, i32
  }
  func.func @transform_2(%arg0: i32, %arg1: memref<1xi32, #tpu.memory_space<smem>>) -> (i32, i32) {
    %c0_i32 = arith.constant 0 : i32
    %c0_i32_0 = arith.constant 0 : i32
    %c0_i32_1 = arith.constant 0 : i32
    return %c0_i32, %c0_i32_0 : i32, i32
  }
  func.func @transform_3(%arg0: i32, %arg1: memref<1xi32, #tpu.memory_space<smem>>) -> (i32, i32) {
    %c0_i32 = arith.constant 0 : i32
    %c0_i32_0 = arith.constant 0 : i32
    %c0_i32_1 = arith.constant 0 : i32
    return %c0_i32, %c0_i32_0 : i32, i32
  }
  func.func @transform_4(%arg0: i32, %arg1: memref<1xi32, #tpu.memory_space<smem>>) -> (i32, i32) {
    %c0_i32 = arith.constant 0 : i32
    %c0_i32_0 = arith.constant 0 : i32
    %c0_i32_1 = arith.constant 0 : i32
    return %c0_i32, %c0_i32_0 : i32, i32
  }
  func.func @transform_5(%arg0: i32, %arg1: memref<1xi32, #tpu.memory_space<smem>>) -> (i32, i32) {
    %c0_i32 = arith.constant 0 : i32
    %c0_i32_0 = arith.constant 0 : i32
    %c0_i32_1 = arith.constant 0 : i32
    return %c0_i32, %c0_i32_0 : i32, i32
  }
  func.func @transform_6(%arg0: i32, %arg1: memref<1xi32, #tpu.memory_space<smem>>) -> (i32, i32) {
    %c0_i32 = arith.constant 0 : i32
    %c0_i32_0 = arith.constant 0 : i32
    %c0_i32_1 = arith.constant 0 : i32
    return %c0_i32, %c0_i32_0 : i32, i32
  }
  func.func @transform_7(%arg0: i32, %arg1: memref<1xi32, #tpu.memory_space<smem>>) -> (i32, i32) {
    %c0_i32 = arith.constant 0 : i32
    %c0_i32_0 = arith.constant 0 : i32
    return %arg0, %c0_i32 : i32, i32
  }
}

</mosaic_0001>

<llo_original>
// kernel: tpu_custom_call.1
$region0: #{tpu_custom_call.1}
  #allocation0 [shape = 'u32[]', space=smem, size = 0x4, offset = 0x4, fixed_abs, tag = 'smem constant byte address 0x4 - core index']
  #allocation1 [shape = 'u32[144,128]{1,0:T(1,128)}', space=vmem, size = 0x12000, scoped, tag = 'internal scratch']
  #allocation2 [shape = 'f32[8,16,1024]{2,1,0:T(8,128)}', space=vmem, size = 0x80000, scoped, tag = 'scratch operand']
  #allocation3 [shape = 's32[1]{0}', space=sflag, size = 0x4, scoped, tag = 'scoped memory for tpu_custom_call.1']
  #allocation4 [shape = 's32[1]{0:T(128)S(6)}', space=smem, size = 0x200, scoped, tag = 'prefetched SMEM operand 0']
  %s0 = inlined_call_operand.<no memory space> [shape: s32[1], index: 0, kind: input, shape index: {}]
  %s1 = inlined_call_operand.hbm [shape: bf16[8,16,128], index: 1, kind: input, shape index: {}]
  %s2 = inlined_call_operand.vmem [shape: s32[16,1], index: 2, kind: input, shape index: {}]
  %s3 = inlined_call_operand.hbm [shape: bf16[128,1024], index: 3, kind: input, shape index: {}]
  %s4 = inlined_call_operand.hbm [shape: bf16[128,512], index: 4, kind: input, shape index: {}]
  %s5 = inlined_call_operand.vmem [shape: f32[1,512], index: 5, kind: input, shape index: {}]
  %s6 = inlined_call_operand.hbm [shape: bf16[128,512], index: 6, kind: input, shape index: {}]
  %s7 = inlined_call_operand.vmem [shape: f32[1,512], index: 7, kind: input, shape index: {}]
  %s8 = inlined_call_operand.hbm [shape: f32[16,256], index: 8, kind: output, shape index: {}]
  %s9 = sld [smem:[#allocation0]]
  $region61: #{tpu_custom_call.1} parent=0
    _
  %s11 = ssub.s32 1, %s9
  %s12 = scalar_select 0, %s11, %s9
  %13 = sst [smem:[#allocation4]] %s0
  $region1: #{tpu_custom_call.1} parent=0
    #allocation5 [shape = 'u8[32768]{0}', space=vmem, size = 0x8000, scoped, tag = 'input window, operand 1, single buffered']
    #allocation6 [shape = 's32[1]{0}', space=sflag, size = 0x4, scoped, tag = 'scoped memory for tpu_custom_call.1']
    #allocation7 [shape = 's32[1]{0}', space=sflag, size = 0x4, scoped, tag = 'scoped memory for tpu_custom_call.1']
    #allocation8 [shape = 'u8[262144]{0}', space=vmem, size = 0x40000, scoped, tag = 'input window, operand 3, single buffered']
    #allocation9 [shape = 's32[1]{0}', space=sflag, size = 0x4, scoped, tag = 'scoped memory for tpu_custom_call.1']
    #allocation10 [shape = 'u8[131072]{0}', space=vmem, size = 0x20000, scoped, tag = 'input window, operand 4, single buffered']
    #allocation11 [shape = 'u8[131072]{0}', space=vmem, size = 0x20000, scoped, tag = 'input window, operand 6, single buffered']
    #allocation12 [shape = 's32[1]{0}', space=sflag, size = 0x4, scoped, tag = 'scoped memory for tpu_custom_call.1']
    #allocation13 [shape = 'u8[16384]{0}', space=vmem, size = 0x4000, scoped, tag = 'output window, operand 0, single buffered']
    %14 = vsyncpa [#allocation6], 0
    %15 = vsyncpa [#allocation9], 0
    %16 = vsyncpa [#allocation12], 0
    %17 = vsyncpa [#allocation7], 0
    // Predicated region
    $region2: #{tpu_custom_call.1} parent=1 // pred_check
      _
    $region3: #{tpu_custom_call.1} parent=1 // pred_check_branch
      %19 = sbr.rel (0) target = $region5
    $region4: #{tpu_custom_call.1} parent=1 // pred_region
      %s21 = ssub.s32 1024, 1024
      %22 = vsyncadd [#allocation6], %s21
      %s23 = sshll.u32 [#allocation5], 4
      %s24 = int_to_ptr.vmem [resolvable:$true] %s23
      %29 = dma.hbm_to_vmem [thread:$0]  %s1, 1024, %s24, [#allocation6], 64, 64, 4
    $region5: #{tpu_custom_call.1} parent=1 // pred_fallthru
      _
    // Predicated region
    $region6: #{tpu_custom_call.1} parent=1 // pred_check
      _
    $region7: #{tpu_custom_call.1} parent=1 // pred_check_branch
      %31 = sbr.rel (0) target = $region9
    $region8: #{tpu_custom_call.1} parent=1 // pred_region
      _
    $region9: #{tpu_custom_call.1} parent=1 // pred_fallthru
      _
    // Predicated region
    $region10: #{tpu_custom_call.1} parent=1 // pred_check
      _
    $region11: #{tpu_custom_call.1} parent=1 // pred_check_branch
      %33 = sbr.rel (0) target = $region13
    $region12: #{tpu_custom_call.1} parent=1 // pred_region
      %s35 = ssub.s32 8192, 8192
      %36 = vsyncadd [#allocation9], %s35
      %s37 = sshll.u32 [#allocation8], 4
      %s38 = int_to_ptr.vmem [resolvable:$true] %s37
      %43 = dma.hbm_to_vmem [thread:$0]  %s3, 8192, %s38, [#allocation9], 512, 512, 32
    $region13: #{tpu_custom_call.1} parent=1 // pred_fallthru
      _
    // Predicated region
    $region14: #{tpu_custom_call.1} parent=1 // pred_check
      _
    $region15: #{tpu_custom_call.1} parent=1 // pred_check_branch
      %45 = sbr.rel (0) target = $region17
    $region16: #{tpu_custom_call.1} parent=1 // pred_region
      %s47 = ssub.s32 4096, 4096
      %48 = vsyncadd [#allocation9], %s47
      %s49 = sshll.u32 [#allocation10], 4
      %s50 = int_to_ptr.vmem [resolvable:$true] %s49
      %55 = dma.hbm_to_vmem [thread:$0]  %s4, 4096, %s50, [#allocation9], 256, 256, 16
    $region17: #{tpu_custom_call.1} parent=1 // pred_fallthru
      _
    // Predicated region
    $region18: #{tpu_custom_call.1} parent=1 // pred_check
      _
    $region19: #{tpu_custom_call.1} parent=1 // pred_check_branch
      %57 = sbr.rel (0) target = $region21
    $region20: #{tpu_custom_call.1} parent=1 // pred_region
      _
    $region21: #{tpu_custom_call.1} parent=1 // pred_fallthru
      _
    // Predicated region
    $region22: #{tpu_custom_call.1} parent=1 // pred_check
      _
    $region23: #{tpu_custom_call.1} parent=1 // pred_check_branch
      %59 = sbr.rel (0) target = $region25
    $region24: #{tpu_custom_call.1} parent=1 // pred_region
      %s61 = ssub.s32 4096, 4096
      %62 = vsyncadd [#allocation12], %s61
      %s63 = sshll.u32 [#allocation11], 4
      %s64 = int_to_ptr.vmem [resolvable:$true] %s63
      %69 = dma.hbm_to_vmem [thread:$0]  %s6, 4096, %s64, [#allocation12], 256, 256, 16
    $region25: #{tpu_custom_call.1} parent=1 // pred_fallthru
      _
    // Predicated region
    $region26: #{tpu_custom_call.1} parent=1 // pred_check
      _
    $region27: #{tpu_custom_call.1} parent=1 // pred_check_branch
      %71 = sbr.rel (0) target = $region29
    $region28: #{tpu_custom_call.1} parent=1 // pred_region
      _
    $region29: #{tpu_custom_call.1} parent=1 // pred_fallthru
      _
    // Predicated region
    $region30: #{tpu_custom_call.1} parent=1 // pred_check
      _
    $region31: #{tpu_custom_call.1} parent=1 // pred_check_branch
      %73 = sbr.rel (0) target = $region33
    $region32: #{tpu_custom_call.1} parent=1 // pred_region
      %74 = dma.done [#allocation6], 1024
    $region33: #{tpu_custom_call.1} parent=1 // pred_fallthru
      _
    // Predicated region
    $region34: #{tpu_custom_call.1} parent=1 // pred_check
      _
    $region35: #{tpu_custom_call.1} parent=1 // pred_check_branch
      %76 = sbr.rel (0) target = $region37
    $region36: #{tpu_custom_call.1} parent=1 // pred_region
      %77 = dma.done [#allocation9], 8192
    $region37: #{tpu_custom_call.1} parent=1 // pred_fallthru
      _
    // Predicated region
    $region38: #{tpu_custom_call.1} parent=1 // pred_check
      _
    $region39: #{tpu_custom_call.1} parent=1 // pred_check_branch
      %79 = sbr.rel (0) target = $region41
    $region40: #{tpu_custom_call.1} parent=1 // pred_region
      %80 = dma.done [#allocation9], 4096
    $region41: #{tpu_custom_call.1} parent=1 // pred_fallthru
      _
    // Predicated region
    $region42: #{tpu_custom_call.1} parent=1 // pred_check
      _
    $region43: #{tpu_custom_call.1} parent=1 // pred_check_branch
      %82 = sbr.rel (0) target = $region45
    $region44: #{tpu_custom_call.1} parent=1 // pred_region
      %83 = dma.done [#allocation12], 4096
    $region45: #{tpu_custom_call.1} parent=1 // pred_fallthru
      _
    %v85 = vld [vmem:[#allocation5] sm:$0xf]
    %v86 = vld [vmem:[#allocation5 + $0x4] sm:$0xf]
    %v87 = vld [vmem:[#allocation5 + $0x8] sm:$0xf]
    %v88 = vld [vmem:[#allocation5 + $0xc] sm:$0xf]
    %v89 = vld [vmem:[#allocation5 + $0x10] sm:$0xf]
    %v90 = vld [vmem:[#allocation5 + $0x14] sm:$0xf]
    %v91 = vld [vmem:[#allocation5 + $0x18] sm:$0xf]
    %v92 = vld [vmem:[#allocation5 + $0x1c] sm:$0xf]
    %v93 = vld [vmem:[#allocation5 + $0x20] sm:$0xf]
    %v94 = vld [vmem:[#allocation5 + $0x24] sm:$0xf]
    %v95 = vld [vmem:[#allocation5 + $0x28] sm:$0xf]
    %v96 = vld [vmem:[#allocation5 + $0x2c] sm:$0xf]
    %v97 = vld [vmem:[#allocation5 + $0x30] sm:$0xf]
    %v98 = vld [vmem:[#allocation5 + $0x34] sm:$0xf]
    %v99 = vld [vmem:[#allocation5 + $0x38] sm:$0xf]
    %v100 = vld [vmem:[#allocation5 + $0x3c] sm:$0xf]
    %v101 = vld [vmem:[#allocation8] sm:$0xff]
    %v102 = vld [vmem:[#allocation8 + $0x8] sm:$0xff]
    %v103 = vld [vmem:[#allocation8 + $0x10] sm:$0xff]
    %v104 = vld [vmem:[#allocation8 + $0x18] sm:$0xff]
    %v105 = vld [vmem:[#allocation8 + $0x20] sm:$0xff]
    %v106 = vld [vmem:[#allocation8 + $0x28] sm:$0xff]
    %v107 = vld [vmem:[#allocation8 + $0x30] sm:$0xff]
    %v108 = vld [vmem:[#allocation8 + $0x38] sm:$0xff]
    %v109 = vld [vmem:[#allocation8 + $0x40] sm:$0xff]
    %v110 = vld [vmem:[#allocation8 + $0x48] sm:$0xff]
    %v111 = vld [vmem:[#allocation8 + $0x50] sm:$0xff]
    %v112 = vld [vmem:[#allocation8 + $0x58] sm:$0xff]
    %v113 = vld [vmem:[#allocation8 + $0x60] sm:$0xff]
    %v114 = vld [vmem:[#allocation8 + $0x68] sm:$0xff]
    %v115 = vld [vmem:[#allocation8 + $0x70] sm:$0xff]
    %v116 = vld [vmem:[#allocation8 + $0x78] sm:$0xff]
    %v117 = vld [vmem:[#allocation8 + $0x80] sm:$0xff]
    %v118 = vld [vmem:[#allocation8 + $0x88] sm:$0xff]
    %v119 = vld [vmem:[#allocation8 + $0x90] sm:$0xff]
    %v120 = vld [vmem:[#allocation8 + $0x98] sm:$0xff]
    %v121 = vld [vmem:[#allocation8 + $0xa0] sm:$0xff]
    %v122 = vld [vmem:[#allocation8 + $0xa8] sm:$0xff]
    %v123 = vld [vmem:[#allocation8 + $0xb0] sm:$0xff]
    %v124 = vld [vmem:[#allocation8 + $0xb8] sm:$0xff]
    %v125 = vld [vmem:[#allocation8 + $0xc0] sm:$0xff]
    %v126 = vld [vmem:[#allocation8 + $0xc8] sm:$0xff]
    %v127 = vld [vmem:[#allocation8 + $0xd0] sm:$0xff]
    %v128 = vld [vmem:[#allocation8 + $0xd8] sm:$0xff]
    %v129 = vld [vmem:[#allocation8 + $0xe0] sm:$0xff]
    %v130 = vld [vmem:[#allocation8 + $0xe8] sm:$0xff]
    %v131 = vld [vmem:[#allocation8 + $0xf0] sm:$0xff]
    %v132 = vld [vmem:[#allocation8 + $0xf8] sm:$0xff]
    %v133 = vld [vmem:[#allocation8 + $0x100] sm:$0xff]
    %v134 = vld [vmem:[#allocation8 + $0x108] sm:$0xff]
    %v135 = vld [vmem:[#allocation8 + $0x110] sm:$0xff]
    %v136 = vld [vmem:[#allocation8 + $0x118] sm:$0xff]
    %v137 = vld [vmem:[#allocation8 + $0x120] sm:$0xff]
    %v138 = vld [vmem:[#allocation8 + $0x128] sm:$0xff]
    %v139 = vld [vmem:[#allocation8 + $0x130] sm:$0xff]
    %v140 = vld [vmem:[#allocation8 + $0x138] sm:$0xff]
    %v141 = vld [vmem:[#allocation8 + $0x140] sm:$0xff]
    %v142 = vld [vmem:[#allocation8 + $0x148] sm:$0xff]
    %v143 = vld [vmem:[#allocation8 + $0x150] sm:$0xff]
    %v144 = vld [vmem:[#allocation8 + $0x158] sm:$0xff]
    %v145 = vld [vmem:[#allocation8 + $0x160] sm:$0xff]
    %v146 = vld [vmem:[#allocation8 + $0x168] sm:$0xff]
    %v147 = vld [vmem:[#allocation8 + $0x170] sm:$0xff]
    %v148 = vld [vmem:[#allocation8 + $0x178] sm:$0xff]
    %v149 = vld [vmem:[#allocation8 + $0x180] sm:$0xff]
    %v150 = vld [vmem:[#allocation8 + $0x188] sm:$0xff]
    %v151 = vld [vmem:[#allocation8 + $0x190] sm:$0xff]
    %v152 = vld [vmem:[#allocation8 + $0x198] sm:$0xff]
    %v153 = vld [vmem:[#allocation8 + $0x1a0] sm:$0xff]
    %v154 = vld [vmem:[#allocation8 + $0x1a8] sm:$0xff]
    %v155 = vld [vmem:[#allocation8 + $0x1b0] sm:$0xff]
    %v156 = vld [vmem:[#allocation8 + $0x1b8] sm:$0xff]
    %v157 = vld [vmem:[#allocation8 + $0x1c0] sm:$0xff]
    %v158 = vld [vmem:[#allocation8 + $0x1c8] sm:$0xff]
    %v159 = vld [vmem:[#allocation8 + $0x1d0] sm:$0xff]
    %v160 = vld [vmem:[#allocation8 + $0x1d8] sm:$0xff]
    %v161 = vld [vmem:[#allocation8 + $0x1e0] sm:$0xff]
    %v162 = vld [vmem:[#allocation8 + $0x1e8] sm:$0xff]
    %v163 = vld [vmem:[#allocation8 + $0x1f0] sm:$0xff]
    %v164 = vld [vmem:[#allocation8 + $0x1f8] sm:$0xff]
    %v181 = vunpack.c.l.b16 %v85
    %v182 = vunpack.c.l.b16 %v86
    %v183 = vunpack.c.l.b16 %v87
    %v184 = vunpack.c.l.b16 %v88
    %v185 = vunpack.c.l.b16 %v89
    %v186 = vunpack.c.l.b16 %v90
    %v187 = vunpack.c.l.b16 %v91
    %v188 = vunpack.c.l.b16 %v92
    %v189 = vunpack.c.l.b16 %v93
    %v190 = vunpack.c.l.b16 %v94
    %v191 = vunpack.c.l.b16 %v95
    %v192 = vunpack.c.l.b16 %v96
    %v193 = vunpack.c.l.b16 %v97
    %v194 = vunpack.c.l.b16 %v98
    %v195 = vunpack.c.l.b16 %v99
    %v196 = vunpack.c.l.b16 %v100
    %v197 = vpack.c.b16 %v182, %v181
    %v198 = vpack.c.b16 %v184, %v183
    %v199 = vpack.c.b16 %v186, %v185
    %v200 = vpack.c.b16 %v188, %v187
    %v201 = vpack.c.b16 %v190, %v189
    %v202 = vpack.c.b16 %v192, %v191
    %v203 = vpack.c.b16 %v194, %v193
    %v204 = vpack.c.b16 %v196, %v195
    %v277 = vunpack.c.l.b16 %v101
    %v278 = vunpack.c.h.b16 %v101
    %v279 = vunpack.c.l.b16 %v102
    %v280 = vunpack.c.h.b16 %v102
    %v281 = vunpack.c.l.b16 %v103
    %v282 = vunpack.c.h.b16 %v103
    %v283 = vunpack.c.l.b16 %v104
    %v284 = vunpack.c.h.b16 %v104
    %v285 = vunpack.c.l.b16 %v105
    %v286 = vunpack.c.h.b16 %v105
    %v287 = vunpack.c.l.b16 %v106
    %v288 = vunpack.c.h.b16 %v106
    %v289 = vunpack.c.l.b16 %v107
    %v290 = vunpack.c.h.b16 %v107
    %v291 = vunpack.c.l.b16 %v108
    %v292 = vunpack.c.h.b16 %v108
    %v293 = vunpack.c.l.b16 %v109
    %v294 = vunpack.c.h.b16 %v109
    %v295 = vunpack.c.l.b16 %v110
    %v296 = vunpack.c.h.b16 %v110
    %v297 = vunpack.c.l.b16 %v111
    %v298 = vunpack.c.h.b16 %v111
    %v299 = vunpack.c.l.b16 %v112
    %v300 = vunpack.c.h.b16 %v112
    %v301 = vunpack.c.l.b16 %v113
    %v302 = vunpack.c.h.b16 %v113
    %v303 = vunpack.c.l.b16 %v114
    %v304 = vunpack.c.h.b16 %v114
    %v305 = vunpack.c.l.b16 %v115
    %v306 = vunpack.c.h.b16 %v115
    %v307 = vunpack.c.l.b16 %v116
    %v308 = vunpack.c.h.b16 %v116
    %v309 = vunpack.c.l.b16 %v117
    %v310 = vunpack.c.h.b16 %v117
    %v311 = vunpack.c.l.b16 %v118
    %v312 = vunpack.c.h.b16 %v118
    %v313 = vunpack.c.l.b16 %v119
    %v314 = vunpack.c.h.b16 %v119
    %v315 = vunpack.c.l.b16 %v120
    %v316 = vunpack.c.h.b16 %v120
    %v317 = vunpack.c.l.b16 %v121
    %v318 = vunpack.c.h.b16 %v121
    %v319 = vunpack.c.l.b16 %v122
    %v320 = vunpack.c.h.b16 %v122
    %v321 = vunpack.c.l.b16 %v123
    %v322 = vunpack.c.h.b16 %v123
    %v323 = vunpack.c.l.b16 %v124
    %v324 = vunpack.c.h.b16 %v124
    %v325 = vunpack.c.l.b16 %v125
    %v326 = vunpack.c.h.b16 %v125
    %v327 = vunpack.c.l.b16 %v126
    %v328 = vunpack.c.h.b16 %v126
    %v329 = vunpack.c.l.b16 %v127
    %v330 = vunpack.c.h.b16 %v127
    %v331 = vunpack.c.l.b16 %v128
    %v332 = vunpack.c.h.b16 %v128
    %v333 = vunpack.c.l.b16 %v129
    %v334 = vunpack.c.h.b16 %v129
    %v335 = vunpack.c.l.b16 %v130
    %v336 = vunpack.c.h.b16 %v130
    %v337 = vunpack.c.l.b16 %v131
    %v338 = vunpack.c.h.b16 %v131
    %v339 = vunpack.c.l.b16 %v132
    %v340 = vunpack.c.h.b16 %v132
    %v341 = vunpack.c.l.b16 %v133
    %v342 = vunpack.c.h.b16 %v133
    %v343 = vunpack.c.l.b16 %v134
    %v344 = vunpack.c.h.b16 %v134
    %v345 = vunpack.c.l.b16 %v135
    %v346 = vunpack.c.h.b16 %v135
    %v347 = vunpack.c.l.b16 %v136
    %v348 = vunpack.c.h.b16 %v136
    %v349 = vunpack.c.l.b16 %v137
    %v350 = vunpack.c.h.b16 %v137
    %v351 = vunpack.c.l.b16 %v138
    %v352 = vunpack.c.h.b16 %v138
    %v353 = vunpack.c.l.b16 %v139
    %v354 = vunpack.c.h.b16 %v139
    %v355 = vunpack.c.l.b16 %v140
    %v356 = vunpack.c.h.b16 %v140
    %v357 = vunpack.c.l.b16 %v141
    %v358 = vunpack.c.h.b16 %v141
    %v359 = vunpack.c.l.b16 %v142
    %v360 = vunpack.c.h.b16 %v142
    %v361 = vunpack.c.l.b16 %v143
    %v362 = vunpack.c.h.b16 %v143
    %v363 = vunpack.c.l.b16 %v144
    %v364 = vunpack.c.h.b16 %v144
    %v365 = vunpack.c.l.b16 %v145
    %v366 = vunpack.c.h.b16 %v145
    %v367 = vunpack.c.l.b16 %v146
    %v368 = vunpack.c.h.b16 %v146
    %v369 = vunpack.c.l.b16 %v147
    %v370 = vunpack.c.h.b16 %v147
    %v371 = vunpack.c.l.b16 %v148
    %v372 = vunpack.c.h.b16 %v148
    %v373 = vunpack.c.l.b16 %v149
    %v374 = vunpack.c.h.b16 %v149
    %v375 = vunpack.c.l.b16 %v150
    %v376 = vunpack.c.h.b16 %v150
    %v377 = vunpack.c.l.b16 %v151
    %v378 = vunpack.c.h.b16 %v151
    %v379 = vunpack.c.l.b16 %v152
    %v380 = vunpack.c.h.b16 %v152
    %v381 = vunpack.c.l.b16 %v153
    %v382 = vunpack.c.h.b16 %v153
    %v383 = vunpack.c.l.b16 %v154
    %v384 = vunpack.c.h.b16 %v154
    %v385 = vunpack.c.l.b16 %v155
    %v386 = vunpack.c.h.b16 %v155
    %v387 = vunpack.c.l.b16 %v156
    %v388 = vunpack.c.h.b16 %v156
    %v389 = vunpack.c.l.b16 %v157
    %v390 = vunpack.c.h.b16 %v157
    %v391 = vunpack.c.l.b16 %v158
    %v392 = vunpack.c.h.b16 %v158
    %v393 = vunpack.c.l.b16 %v159
    %v394 = vunpack.c.h.b16 %v159
    %v395 = vunpack.c.l.b16 %v160
    %v396 = vunpack.c.h.b16 %v160
    %v397 = vunpack.c.l.b16 %v161
    %v398 = vunpack.c.h.b16 %v161
    %v399 = vunpack.c.l.b16 %v162
    %v400 = vunpack.c.h.b16 %v162
    %v401 = vunpack.c.l.b16 %v163
    %v402 = vunpack.c.h.b16 %v163
    %v403 = vunpack.c.l.b16 %v164
    %v404 = vunpack.c.h.b16 %v164
    %v405 = vpack.c.b16 %v285, %v277
    %v406 = vpack.c.b16 %v286, %v278
    %v407 = vpack.c.b16 %v287, %v279
    %v408 = vpack.c.b16 %v288, %v280
    %v409 = vpack.c.b16 %v289, %v281
    %v410 = vpack.c.b16 %v290, %v282
    %v411 = vpack.c.b16 %v291, %v283
    %v412 = vpack.c.b16 %v292, %v284
    %v413 = vpack.c.b16 %v301, %v293
    %v414 = vpack.c.b16 %v302, %v294
    %v415 = vpack.c.b16 %v303, %v295
    %v416 = vpack.c.b16 %v304, %v296
    %v417 = vpack.c.b16 %v305, %v297
    %v418 = vpack.c.b16 %v306, %v298
    %v419 = vpack.c.b16 %v307, %v299
    %v420 = vpack.c.b16 %v308, %v300
    %v421 = vpack.c.b16 %v317, %v309
    %v422 = vpack.c.b16 %v318, %v310
    %v423 = vpack.c.b16 %v319, %v311
    %v424 = vpack.c.b16 %v320, %v312
    %v425 = vpack.c.b16 %v321, %v313
    %v426 = vpack.c.b16 %v322, %v314
    %v427 = vpack.c.b16 %v323, %v315
    %v428 = vpack.c.b16 %v324, %v316
    %v429 = vpack.c.b16 %v333, %v325
    %v430 = vpack.c.b16 %v334, %v326
    %v431 = vpack.c.b16 %v335, %v327
    %v432 = vpack.c.b16 %v336, %v328
    %v433 = vpack.c.b16 %v337, %v329
    %v434 = vpack.c.b16 %v338, %v330
    %v435 = vpack.c.b16 %v339, %v331
    %v436 = vpack.c.b16 %v340, %v332
    %v437 = vpack.c.b16 %v349, %v341
    %v438 = vpack.c.b16 %v350, %v342
    %v439 = vpack.c.b16 %v351, %v343
    %v440 = vpack.c.b16 %v352, %v344
    %v441 = vpack.c.b16 %v353, %v345
    %v442 = vpack.c.b16 %v354, %v346
    %v443 = vpack.c.b16 %v355, %v347
    %v444 = vpack.c.b16 %v356, %v348
    %v445 = vpack.c.b16 %v365, %v357
    %v446 = vpack.c.b16 %v366, %v358
    %v447 = vpack.c.b16 %v367, %v359
    %v448 = vpack.c.b16 %v368, %v360
    %v449 = vpack.c.b16 %v369, %v361
    %v450 = vpack.c.b16 %v370, %v362
    %v451 = vpack.c.b16 %v371, %v363
    %v452 = vpack.c.b16 %v372, %v364
    %v453 = vpack.c.b16 %v381, %v373
    %v454 = vpack.c.b16 %v382, %v374
    %v455 = vpack.c.b16 %v383, %v375
    %v456 = vpack.c.b16 %v384, %v376
    %v457 = vpack.c.b16 %v385, %v377
    %v458 = vpack.c.b16 %v386, %v378
    %v459 = vpack.c.b16 %v387, %v379
    %v460 = vpack.c.b16 %v388, %v380
    %v461 = vpack.c.b16 %v397, %v389
    %v462 = vpack.c.b16 %v398, %v390
    %v463 = vpack.c.b16 %v399, %v391
    %v464 = vpack.c.b16 %v400, %v392
    %v465 = vpack.c.b16 %v401, %v393
    %v466 = vpack.c.b16 %v402, %v394
    %v467 = vpack.c.b16 %v403, %v395
    %v468 = vpack.c.b16 %v404, %v396
    %533 = vmatprep.subr.bf16.mxu0 %v462
    %534 = vmatpush1.bf16.msra.mxu0 %v461
    %535 = vmatprep.subr.bf16.mxu0 %v454
    %536 = vmatpush1.bf16.msra.mxu0 %v453
    %537 = vmatprep.subr.bf16.mxu0 %v446
    %538 = vmatpush1.bf16.msra.mxu0 %v445
    %539 = vmatprep.subr.bf16.mxu0 %v438
    %540 = vmatpush1.bf16.msra.mxu0 %v437
    %541 = vmatprep.subr.bf16.mxu0 %v430
    %542 = vmatpush1.bf16.msra.mxu0 %v429
    %543 = vmatprep.subr.bf16.mxu0 %v422
    %544 = vmatpush1.bf16.msra.mxu0 %v421
    %545 = vmatprep.subr.bf16.mxu0 %v414
    %546 = vmatpush1.bf16.msra.mxu0 %v413
    %547 = vmatprep.subr.bf16.mxu0 %v406
    %548 = vmatpush1.bf16.msra.mxu0 %v405
    %549 = vmatprep.subr.bf16.mxu0 0
    %550 = vmatpush2.bf16.msra.mxu0 0
    %551 = vmatprep.subr.bf16.mxu0 0
    %552 = vmatpush2.bf16.msra.mxu0 0
    %553 = vmatprep.subr.bf16.mxu0 0
    %554 = vmatpush2.bf16.msra.mxu0 0
    %555 = vmatprep.subr.bf16.mxu0 0
    %556 = vmatpush2.bf16.msra.mxu0 0
    %557 = vmatprep.subr.bf16.mxu0 0
    %558 = vmatpush2.bf16.msra.mxu0 0
    %559 = vmatprep.subr.bf16.mxu0 0
    %560 = vmatpush2.bf16.msra.mxu0 0
    %561 = vmatprep.subr.bf16.mxu0 0
    %562 = vmatpush2.bf16.msra.mxu0 0
    %563 = vmatprep.subr.bf16.mxu0 0
    %564 = vmatpush2.bf16.msra.mxu0 0
    %565 = vmatprep.mubr.bf16.mxu0 0
    %566 = vmatmul.mubr.bf16.gmra.mxu0 %v197
    %v567 = vpop.f32.mrf.mxu0
    %v568 = vadd.f32 0.0, %v567
    %v569 = vpop.f32.mrf.mxu0
    %v570 = vadd.f32 0.0, %v569
    %v571 = vpop.f32.mrf.mxu0
    %v572 = vadd.f32 0.0, %v571
    %v573 = vpop.f32.mrf.mxu0
    %v574 = vadd.f32 0.0, %v573
    %575 = vmatprep.mubr.bf16.mxu0 0
    %576 = vmatmul.mubr.bf16.gmra.mxu0 %v198
    %v577 = vpop.f32.mrf.mxu0
    %v578 = vadd.f32 0.0, %v577
    %v579 = vpop.f32.mrf.mxu0
    %v580 = vadd.f32 0.0, %v579
    %v581 = vpop.f32.mrf.mxu0
    %v582 = vadd.f32 0.0, %v581
    %v583 = vpop.f32.mrf.mxu0
    %v584 = vadd.f32 0.0, %v583
    %585 = vmatprep.mubr.bf16.mxu0 0
    %586 = vmatmul.mubr.bf16.gmra.mxu0 %v199
    %v587 = vpop.f32.mrf.mxu0
    %v588 = vadd.f32 0.0, %v587
    %v589 = vpop.f32.mrf.mxu0
    %v590 = vadd.f32 0.0, %v589
    %v591 = vpop.f32.mrf.mxu0
    %v592 = vadd.f32 0.0, %v591
    %v593 = vpop.f32.mrf.mxu0
    %v594 = vadd.f32 0.0, %v593
    %595 = vmatprep.mubr.bf16.mxu0 0
    %596 = vmatmul.mubr.bf16.gmra.mxu0 %v200
    %v597 = vpop.f32.mrf.mxu0
    %v598 = vadd.f32 0.0, %v597
    %v599 = vpop.f32.mrf.mxu0
    %v600 = vadd.f32 0.0, %v599
    %v601 = vpop.f32.mrf.mxu0
    %v602 = vadd.f32 0.0, %v601
    %v603 = vpop.f32.mrf.mxu0
    %v604 = vadd.f32 0.0, %v603
    %605 = vmatprep.mubr.bf16.mxu0 0
    %606 = vmatmul.mubr.bf16.gmra.mxu0 %v201
    %v607 = vpop.f32.mrf.mxu0
    %v608 = vadd.f32 0.0, %v607
    %v609 = vpop.f32.mrf.mxu0
    %v610 = vadd.f32 0.0, %v609
    %v611 = vpop.f32.mrf.mxu0
    %v612 = vadd.f32 0.0, %v611
    %v613 = vpop.f32.mrf.mxu0
    %v614 = vadd.f32 0.0, %v613
    %615 = vmatprep.mubr.bf16.mxu0 0
    %616 = vmatmul.mubr.bf16.gmra.mxu0 %v202
    %v617 = vpop.f32.mrf.mxu0
    %v618 = vadd.f32 0.0, %v617
    %v619 = vpop.f32.mrf.mxu0
    %v620 = vadd.f32 0.0, %v619
    %v621 = vpop.f32.mrf.mxu0
    %v622 = vadd.f32 0.0, %v621
    %v623 = vpop.f32.mrf.mxu0
    %v624 = vadd.f32 0.0, %v623
    %625 = vmatprep.mubr.bf16.mxu0 0
    %626 = vmatmul.mubr.bf16.gmra.mxu0 %v203
    %v627 = vpop.f32.mrf.mxu0
    %v628 = vadd.f32 0.0, %v627
    %v629 = vpop.f32.mrf.mxu0
    %v630 = vadd.f32 0.0, %v629
    %v631 = vpop.f32.mrf.mxu0
    %v632 = vadd.f32 0.0, %v631
    %v633 = vpop.f32.mrf.mxu0
    %v634 = vadd.f32 0.0, %v633
    %635 = vmatprep.mubr.bf16.mxu0 0
    %636 = vmatmul.mubr.bf16.gmra.mxu0 %v204
    %v637 = vpop.f32.mrf.mxu0
    %v638 = vadd.f32 0.0, %v637
    %v639 = vpop.f32.mrf.mxu0
    %v640 = vadd.f32 0.0, %v639
    %v641 = vpop.f32.mrf.mxu0
    %v642 = vadd.f32 0.0, %v641
    %v643 = vpop.f32.mrf.mxu0
    %v644 = vadd.f32 0.0, %v643
    %645 = vdwg.mxu0
    %646 = vmatprep.subr.bf16.mxu0 %v464
    %647 = vmatpush1.bf16.msra.mxu0 %v463
    %648 = vmatprep.subr.bf16.mxu0 %v456
    %649 = vmatpush1.bf16.msra.mxu0 %v455
    %650 = vmatprep.subr.bf16.mxu0 %v448
    %651 = vmatpush1.bf16.msra.mxu0 %v447
    %652 = vmatprep.subr.bf16.mxu0 %v440
    %653 = vmatpush1.bf16.msra.mxu0 %v439
    %654 = vmatprep.subr.bf16.mxu0 %v432
    %655 = vmatpush1.bf16.msra.mxu0 %v431
    %656 = vmatprep.subr.bf16.mxu0 %v424
    %657 = vmatpush1.bf16.msra.mxu0 %v423
    %658 = vmatprep.subr.bf16.mxu0 %v416
    %659 = vmatpush1.bf16.msra.mxu0 %v415
    %660 = vmatprep.subr.bf16.mxu0 %v408
    %661 = vmatpush1.bf16.msra.mxu0 %v407
    %662 = vmatprep.subr.bf16.mxu0 0
    %663 = vmatpush2.bf16.msra.mxu0 0
    %664 = vmatprep.subr.bf16.mxu0 0
    %665 = vmatpush2.bf16.msra.mxu0 0
    %666 = vmatprep.subr.bf16.mxu0 0
    %667 = vmatpush2.bf16.msra.mxu0 0
    %668 = vmatprep.subr.bf16.mxu0 0
    %669 = vmatpush2.bf16.msra.mxu0 0
    %670 = vmatprep.subr.bf16.mxu0 0
    %671 = vmatpush2.bf16.msra.mxu0 0
    %672 = vmatprep.subr.bf16.mxu0 0
    %673 = vmatpush2.bf16.msra.mxu0 0
    %674 = vmatprep.subr.bf16.mxu0 0
    %675 = vmatpush2.bf16.msra.mxu0 0
    %676 = vmatprep.subr.bf16.mxu0 0
    %677 = vmatpush2.bf16.msra.mxu0 0
    %678 = vmatprep.mubr.bf16.mxu0 0
    %679 = vmatmul.mubr.bf16.gmra.mxu0 %v197
    %v680 = vpop.f32.mrf.mxu0
    %v681 = vadd.f32 0.0, %v680
    %v682 = vpop.f32.mrf.mxu0
    %v683 = vadd.f32 0.0, %v682
    %v684 = vpop.f32.mrf.mxu0
    %v685 = vadd.f32 0.0, %v684
    %v686 = vpop.f32.mrf.mxu0
    %v687 = vadd.f32 0.0, %v686
    %688 = vmatprep.mubr.bf16.mxu0 0
    %689 = vmatmul.mubr.bf16.gmra.mxu0 %v198
    %v690 = vpop.f32.mrf.mxu0
    %v691 = vadd.f32 0.0, %v690
    %v692 = vpop.f32.mrf.mxu0
    %v693 = vadd.f32 0.0, %v692
    %v694 = vpop.f32.mrf.mxu0
    %v695 = vadd.f32 0.0, %v694
    %v696 = vpop.f32.mrf.mxu0
    %v697 = vadd.f32 0.0, %v696
    %698 = vmatprep.mubr.bf16.mxu0 0
    %699 = vmatmul.mubr.bf16.gmra.mxu0 %v199
    %v700 = vpop.f32.mrf.mxu0
    %v701 = vadd.f32 0.0, %v700
    %v702 = vpop.f32.mrf.mxu0
    %v703 = vadd.f32 0.0, %v702
    %v704 = vpop.f32.mrf.mxu0
    %v705 = vadd.f32 0.0, %v704
    %v706 = vpop.f32.mrf.mxu0
    %v707 = vadd.f32 0.0, %v706
    %708 = vmatprep.mubr.bf16.mxu0 0
    %709 = vmatmul.mubr.bf16.gmra.mxu0 %v200
    %v710 = vpop.f32.mrf.mxu0
    %v711 = vadd.f32 0.0, %v710
    %v712 = vpop.f32.mrf.mxu0
    %v713 = vadd.f32 0.0, %v712
    %v714 = vpop.f32.mrf.mxu0
    %v715 = vadd.f32 0.0, %v714
    %v716 = vpop.f32.mrf.mxu0
    %v717 = vadd.f32 0.0, %v716
    %718 = vmatprep.mubr.bf16.mxu0 0
    %719 = vmatmul.mubr.bf16.gmra.mxu0 %v201
    %v720 = vpop.f32.mrf.mxu0
    %v721 = vadd.f32 0.0, %v720
    %v722 = vpop.f32.mrf.mxu0
    %v723 = vadd.f32 0.0, %v722
    %v724 = vpop.f32.mrf.mxu0
    %v725 = vadd.f32 0.0, %v724
    %v726 = vpop.f32.mrf.mxu0
    %v727 = vadd.f32 0.0, %v726
    %728 = vmatprep.mubr.bf16.mxu0 0
    %729 = vmatmul.mubr.bf16.gmra.mxu0 %v202
    %v730 = vpop.f32.mrf.mxu0
    %v731 = vadd.f32 0.0, %v730
    %v732 = vpop.f32.mrf.mxu0
    %v733 = vadd.f32 0.0, %v732
    %v734 = vpop.f32.mrf.mxu0
    %v735 = vadd.f32 0.0, %v734
    %v736 = vpop.f32.mrf.mxu0
    %v737 = vadd.f32 0.0, %v736
    %738 = vmatprep.mubr.bf16.mxu0 0
    %739 = vmatmul.mubr.bf16.gmra.mxu0 %v203
    %v740 = vpop.f32.mrf.mxu0
    %v741 = vadd.f32 0.0, %v740
    %v742 = vpop.f32.mrf.mxu0
    %v743 = vadd.f32 0.0, %v742
    %v744 = vpop.f32.mrf.mxu0
    %v745 = vadd.f32 0.0, %v744
    %v746 = vpop.f32.mrf.mxu0
    %v747 = vadd.f32 0.0, %v746
    %748 = vmatprep.mubr.bf16.mxu0 0
    %749 = vmatmul.mubr.bf16.gmra.mxu0 %v204
    %v750 = vpop.f32.mrf.mxu0
    %v751 = vadd.f32 0.0, %v750
    %v752 = vpop.f32.mrf.mxu0
    %v753 = vadd.f32 0.0, %v752
    %v754 = vpop.f32.mrf.mxu0
    %v755 = vadd.f32 0.0, %v754
    %v756 = vpop.f32.mrf.mxu0
    %v757 = vadd.f32 0.0, %v756
    %758 = vdwg.mxu0
    %759 = vmatprep.subr.bf16.mxu0 %v466
    %760 = vmatpush1.bf16.msra.mxu0 %v465
    %761 = vmatprep.subr.bf16.mxu0 %v458
    %762 = vmatpush1.bf16.msra.mxu0 %v457
    %763 = vmatprep.subr.bf16.mxu0 %v450
    %764 = vmatpush1.bf16.msra.mxu0 %v449
    %765 = vmatprep.subr.bf16.mxu0 %v442
    %766 = vmatpush1.bf16.msra.mxu0 %v441
    %767 = vmatprep.subr.bf16.mxu0 %v434
    %768 = vmatpush1.bf16.msra.mxu0 %v433
    %769 = vmatprep.subr.bf16.mxu0 %v426
    %770 = vmatpush1.bf16.msra.mxu0 %v425
    %771 = vmatprep.subr.bf16.mxu0 %v418
    %772 = vmatpush1.bf16.msra.mxu0 %v417
    %773 = vmatprep.subr.bf16.mxu0 %v410
    %774 = vmatpush1.bf16.msra.mxu0 %v409
    %775 = vmatprep.subr.bf16.mxu0 0
    %776 = vmatpush2.bf16.msra.mxu0 0
    %777 = vmatprep.subr.bf16.mxu0 0
    %778 = vmatpush2.bf16.msra.mxu0 0
    %779 = vmatprep.subr.bf16.mxu0 0
    %780 = vmatpush2.bf16.msra.mxu0 0
    %781 = vmatprep.subr.bf16.mxu0 0
    %782 = vmatpush2.bf16.msra.mxu0 0
    %783 = vmatprep.subr.bf16.mxu0 0
    %784 = vmatpush2.bf16.msra.mxu0 0
    %785 = vmatprep.subr.bf16.mxu0 0
    %786 = vmatpush2.bf16.msra.mxu0 0
    %787 = vmatprep.subr.bf16.mxu0 0
    %788 = vmatpush2.bf16.msra.mxu0 0
    %789 = vmatprep.subr.bf16.mxu0 0
    %790 = vmatpush2.bf16.msra.mxu0 0
    %791 = vmatprep.mubr.bf16.mxu0 0
    %792 = vmatmul.mubr.bf16.gmra.mxu0 %v197
    %v793 = vpop.f32.mrf.mxu0
    %v794 = vadd.f32 0.0, %v793
    %v795 = vpop.f32.mrf.mxu0
    %v796 = vadd.f32 0.0, %v795
    %v797 = vpop.f32.mrf.mxu0
    %v798 = vadd.f32 0.0, %v797
    %v799 = vpop.f32.mrf.mxu0
    %v800 = vadd.f32 0.0, %v799
    %801 = vmatprep.mubr.bf16.mxu0 0
    %802 = vmatmul.mubr.bf16.gmra.mxu0 %v198
    %v803 = vpop.f32.mrf.mxu0
    %v804 = vadd.f32 0.0, %v803
    %v805 = vpop.f32.mrf.mxu0
    %v806 = vadd.f32 0.0, %v805
    %v807 = vpop.f32.mrf.mxu0
    %v808 = vadd.f32 0.0, %v807
    %v809 = vpop.f32.mrf.mxu0
    %v810 = vadd.f32 0.0, %v809
    %811 = vmatprep.mubr.bf16.mxu0 0
    %812 = vmatmul.mubr.bf16.gmra.mxu0 %v199
    %v813 = vpop.f32.mrf.mxu0
    %v814 = vadd.f32 0.0, %v813
    %v815 = vpop.f32.mrf.mxu0
    %v816 = vadd.f32 0.0, %v815
    %v817 = vpop.f32.mrf.mxu0
    %v818 = vadd.f32 0.0, %v817
    %v819 = vpop.f32.mrf.mxu0
    %v820 = vadd.f32 0.0, %v819
    %821 = vmatprep.mubr.bf16.mxu0 0
    %822 = vmatmul.mubr.bf16.gmra.mxu0 %v200
    %v823 = vpop.f32.mrf.mxu0
    %v824 = vadd.f32 0.0, %v823
    %v825 = vpop.f32.mrf.mxu0
    %v826 = vadd.f32 0.0, %v825
    %v827 = vpop.f32.mrf.mxu0
    %v828 = vadd.f32 0.0, %v827
    %v829 = vpop.f32.mrf.mxu0
    %v830 = vadd.f32 0.0, %v829
    %831 = vmatprep.mubr.bf16.mxu0 0
    %832 = vmatmul.mubr.bf16.gmra.mxu0 %v201
    %v833 = vpop.f32.mrf.mxu0
    %v834 = vadd.f32 0.0, %v833
    %v835 = vpop.f32.mrf.mxu0
    %v836 = vadd.f32 0.0, %v835
    %v837 = vpop.f32.mrf.mxu0
    %v838 = vadd.f32 0.0, %v837
    %v839 = vpop.f32.mrf.mxu0
    %v840 = vadd.f32 0.0, %v839
    %841 = vmatprep.mubr.bf16.mxu0 0
    %842 = vmatmul.mubr.bf16.gmra.mxu0 %v202
    %v843 = vpop.f32.mrf.mxu0
    %v844 = vadd.f32 0.0, %v843
    %v845 = vpop.f32.mrf.mxu0
    %v846 = vadd.f32 0.0, %v845
    %v847 = vpop.f32.mrf.mxu0
    %v848 = vadd.f32 0.0, %v847
    %v849 = vpop.f32.mrf.mxu0
    %v850 = vadd.f32 0.0, %v849
    %851 = vmatprep.mubr.bf16.mxu0 0
    %852 = vmatmul.mubr.bf16.gmra.mxu0 %v203
    %v853 = vpop.f32.mrf.mxu0
    %v854 = vadd.f32 0.0, %v853
    %v855 = vpop.f32.mrf.mxu0
    %v856 = vadd.f32 0.0, %v855
    %v857 = vpop.f32.mrf.mxu0
    %v858 = vadd.f32 0.0, %v857
    %v859 = vpop.f32.mrf.mxu0
    %v860 = vadd.f32 0.0, %v859
    %861 = vmatprep.mubr.bf16.mxu0 0
    %862 = vmatmul.mubr.bf16.gmra.mxu0 %v204
    %v863 = vpop.f32.mrf.mxu0
    %v864 = vadd.f32 0.0, %v863
    %v865 = vpop.f32.mrf.mxu0
    %v866 = vadd.f32 0.0, %v865
    %v867 = vpop.f32.mrf.mxu0
    %v868 = vadd.f32 0.0, %v867
    %v869 = vpop.f32.mrf.mxu0
    %v870 = vadd.f32 0.0, %v869
    %871 = vdwg.mxu0
    %872 = vmatprep.subr.bf16.mxu0 %v468
    %873 = vmatpush1.bf16.msra.mxu0 %v467
    %874 = vmatprep.subr.bf16.mxu0 %v460
    %875 = vmatpush1.bf16.msra.mxu0 %v459
    %876 = vmatprep.subr.bf16.mxu0 %v452
    %877 = vmatpush1.bf16.msra.mxu0 %v451
    %878 = vmatprep.subr.bf16.mxu0 %v444
    %879 = vmatpush1.bf16.msra.mxu0 %v443
    %880 = vmatprep.subr.bf16.mxu0 %v436
    %881 = vmatpush1.bf16.msra.mxu0 %v435
    %882 = vmatprep.subr.bf16.mxu0 %v428
    %883 = vmatpush1.bf16.msra.mxu0 %v427
    %884 = vmatprep.subr.bf16.mxu0 %v420
    %885 = vmatpush1.bf16.msra.mxu0 %v419
    %886 = vmatprep.subr.bf16.mxu0 %v412
    %887 = vmatpush1.bf16.msra.mxu0 %v411
    %888 = vmatprep.subr.bf16.mxu0 0
    %889 = vmatpush2.bf16.msra.mxu0 0
    %890 = vmatprep.subr.bf16.mxu0 0
    %891 = vmatpush2.bf16.msra.mxu0 0
    %892 = vmatprep.subr.bf16.mxu0 0
    %893 = vmatpush2.bf16.msra.mxu0 0
    %894 = vmatprep.subr.bf16.mxu0 0
    %895 = vmatpush2.bf16.msra.mxu0 0
    %896 = vmatprep.subr.bf16.mxu0 0
    %897 = vmatpush2.bf16.msra.mxu0 0
    %898 = vmatprep.subr.bf16.mxu0 0
    %899 = vmatpush2.bf16.msra.mxu0 0
    %900 = vmatprep.subr.bf16.mxu0 0
    %901 = vmatpush2.bf16.msra.mxu0 0
    %902 = vmatprep.subr.bf16.mxu0 0
    %903 = vmatpush2.bf16.msra.mxu0 0
    %904 = vmatprep.mubr.bf16.mxu0 0
    %905 = vmatmul.mubr.bf16.gmra.mxu0 %v197
    %v906 = vpop.f32.mrf.mxu0
    %v907 = vadd.f32 0.0, %v906
    %v908 = vpop.f32.mrf.mxu0
    %v909 = vadd.f32 0.0, %v908
    %v910 = vpop.f32.mrf.mxu0
    %v911 = vadd.f32 0.0, %v910
    %v912 = vpop.f32.mrf.mxu0
    %v913 = vadd.f32 0.0, %v912
    %914 = vmatprep.mubr.bf16.mxu0 0
    %915 = vmatmul.mubr.bf16.gmra.mxu0 %v198
    %v916 = vpop.f32.mrf.mxu0
    %v917 = vadd.f32 0.0, %v916
    %v918 = vpop.f32.mrf.mxu0
    %v919 = vadd.f32 0.0, %v918
    %v920 = vpop.f32.mrf.mxu0
    %v921 = vadd.f32 0.0, %v920
    %v922 = vpop.f32.mrf.mxu0
    %v923 = vadd.f32 0.0, %v922
    %924 = vmatprep.mubr.bf16.mxu0 0
    %925 = vmatmul.mubr.bf16.gmra.mxu0 %v199
    %v926 = vpop.f32.mrf.mxu0
    %v927 = vadd.f32 0.0, %v926
    %v928 = vpop.f32.mrf.mxu0
    %v929 = vadd.f32 0.0, %v928
    %v930 = vpop.f32.mrf.mxu0
    %v931 = vadd.f32 0.0, %v930
    %v932 = vpop.f32.mrf.mxu0
    %v933 = vadd.f32 0.0, %v932
    %934 = vmatprep.mubr.bf16.mxu0 0
    %935 = vmatmul.mubr.bf16.gmra.mxu0 %v200
    %v936 = vpop.f32.mrf.mxu0
    %v937 = vadd.f32 0.0, %v936
    %v938 = vpop.f32.mrf.mxu0
    %v939 = vadd.f32 0.0, %v938
    %v940 = vpop.f32.mrf.mxu0
    %v941 = vadd.f32 0.0, %v940
    %v942 = vpop.f32.mrf.mxu0
    %v943 = vadd.f32 0.0, %v942
    %944 = vmatprep.mubr.bf16.mxu0 0
    %945 = vmatmul.mubr.bf16.gmra.mxu0 %v201
    %v946 = vpop.f32.mrf.mxu0
    %v947 = vadd.f32 0.0, %v946
    %v948 = vpop.f32.mrf.mxu0
    %v949 = vadd.f32 0.0, %v948
    %v950 = vpop.f32.mrf.mxu0
    %v951 = vadd.f32 0.0, %v950
    %v952 = vpop.f32.mrf.mxu0
    %v953 = vadd.f32 0.0, %v952
    %954 = vmatprep.mubr.bf16.mxu0 0
    %955 = vmatmul.mubr.bf16.gmra.mxu0 %v202
    %v956 = vpop.f32.mrf.mxu0
    %v957 = vadd.f32 0.0, %v956
    %v958 = vpop.f32.mrf.mxu0
    %v959 = vadd.f32 0.0, %v958
    %v960 = vpop.f32.mrf.mxu0
    %v961 = vadd.f32 0.0, %v960
    %v962 = vpop.f32.mrf.mxu0
    %v963 = vadd.f32 0.0, %v962
    %964 = vmatprep.mubr.bf16.mxu0 0
    %965 = vmatmul.mubr.bf16.gmra.mxu0 %v203
    %v966 = vpop.f32.mrf.mxu0
    %v967 = vadd.f32 0.0, %v966
    %v968 = vpop.f32.mrf.mxu0
    %v969 = vadd.f32 0.0, %v968
    %v970 = vpop.f32.mrf.mxu0
    %v971 = vadd.f32 0.0, %v970
    %v972 = vpop.f32.mrf.mxu0
    %v973 = vadd.f32 0.0, %v972
    %974 = vmatprep.mubr.bf16.mxu0 0
    %975 = vmatmul.mubr.bf16.gmra.mxu0 %v204
    %v976 = vpop.f32.mrf.mxu0
    %v977 = vadd.f32 0.0, %v976
    %v978 = vpop.f32.mrf.mxu0
    %v979 = vadd.f32 0.0, %v978
    %v980 = vpop.f32.mrf.mxu0
    %v981 = vadd.f32 0.0, %v980
    %v982 = vpop.f32.mrf.mxu0
    %v983 = vadd.f32 0.0, %v982
    %984 = vdwg.mxu0
    %985 = vst [vmem:[#allocation2] sm:$0xff] %v568
    %986 = vst [vmem:[#allocation2 + $0x8] sm:$0xff] %v570
    %987 = vst [vmem:[#allocation2 + $0x10] sm:$0xff] %v681
    %988 = vst [vmem:[#allocation2 + $0x18] sm:$0xff] %v683
    %989 = vst [vmem:[#allocation2 + $0x20] sm:$0xff] %v794
    %990 = vst [vmem:[#allocation2 + $0x28] sm:$0xff] %v796
    %991 = vst [vmem:[#allocation2 + $0x30] sm:$0xff] %v907
    %992 = vst [vmem:[#allocation2 + $0x38] sm:$0xff] %v909
    %993 = vst [vmem:[#allocation2 + $0x40] sm:$0xff] %v572
    %994 = vst [vmem:[#allocation2 + $0x48] sm:$0xff] %v574
    %995 = vst [vmem:[#allocation2 + $0x50] sm:$0xff] %v685
    %996 = vst [vmem:[#allocation2 + $0x58] sm:$0xff] %v687
    %997 = vst [vmem:[#allocation2 + $0x60] sm:$0xff] %v798
    %998 = vst [vmem:[#allocation2 + $0x68] sm:$0xff] %v800
    %999 = vst [vmem:[#allocation2 + $0x70] sm:$0xff] %v911
    %1000 = vst [vmem:[#allocation2 + $0x78] sm:$0xff] %v913
    %1001 = vst [vmem:[#allocation2 + $0x80] sm:$0xff] %v578
    %1002 = vst [vmem:[#allocation2 + $0x88] sm:$0xff] %v580
    %1003 = vst [vmem:[#allocation2 + $0x90] sm:$0xff] %v691
    %1004 = vst [vmem:[#allocation2 + $0x98] sm:$0xff] %v693
    %1005 = vst [vmem:[#allocation2 + $0xa0] sm:$0xff] %v804
    %1006 = vst [vmem:[#allocation2 + $0xa8] sm:$0xff] %v806
    %1007 = vst [vmem:[#allocation2 + $0xb0] sm:$0xff] %v917
    %1008 = vst [vmem:[#allocation2 + $0xb8] sm:$0xff] %v919
    %1009 = vst [vmem:[#allocation2 + $0xc0] sm:$0xff] %v582
    %1010 = vst [vmem:[#allocation2 + $0xc8] sm:$0xff] %v584
    %1011 = vst [vmem:[#allocation2 + $0xd0] sm:$0xff] %v695
    %1012 = vst [vmem:[#allocation2 + $0xd8] sm:$0xff] %v697
    %1013 = vst [vmem:[#allocation2 + $0xe0] sm:$0xff] %v808
    %1014 = vst [vmem:[#allocation2 + $0xe8] sm:$0xff] %v810
    %1015 = vst [vmem:[#allocation2 + $0xf0] sm:$0xff] %v921
    %1016 = vst [vmem:[#allocation2 + $0xf8] sm:$0xff] %v923
    %1017 = vst [vmem:[#allocation2 + $0x100] sm:$0xff] %v588
    %1018 = vst [vmem:[#allocation2 + $0x108] sm:$0xff] %v590
    %1019 = vst [vmem:[#allocation2 + $0x110] sm:$0xff] %v701
    %1020 = vst [vmem:[#allocation2 + $0x118] sm:$0xff] %v703
    %1021 = vst [vmem:[#allocation2 + $0x120] sm:$0xff] %v814
    %1022 = vst [vmem:[#allocation2 + $0x128] sm:$0xff] %v816
    %1023 = vst [vmem:[#allocation2 + $0x130] sm:$0xff] %v927
    %1024 = vst [vmem:[#allocation2 + $0x138] sm:$0xff] %v929
    %1025 = vst [vmem:[#allocation2 + $0x140] sm:$0xff] %v592
    %1026 = vst [vmem:[#allocation2 + $0x148] sm:$0xff] %v594
    %1027 = vst [vmem:[#allocation2 + $0x150] sm:$0xff] %v705
    %1028 = vst [vmem:[#allocation2 + $0x158] sm:$0xff] %v707
    %1029 = vst [vmem:[#allocation2 + $0x160] sm:$0xff] %v818
    %1030 = vst [vmem:[#allocation2 + $0x168] sm:$0xff] %v820
    %1031 = vst [vmem:[#allocation2 + $0x170] sm:$0xff] %v931
    %1032 = vst [vmem:[#allocation2 + $0x178] sm:$0xff] %v933
    %1033 = vst [vmem:[#allocation2 + $0x180] sm:$0xff] %v598
    %1034 = vst [vmem:[#allocation2 + $0x188] sm:$0xff] %v600
    %1035 = vst [vmem:[#allocation2 + $0x190] sm:$0xff] %v711
    %1036 = vst [vmem:[#allocation2 + $0x198] sm:$0xff] %v713
    %1037 = vst [vmem:[#allocation2 + $0x1a0] sm:$0xff] %v824
    %1038 = vst [vmem:[#allocation2 + $0x1a8] sm:$0xff] %v826
    %1039 = vst [vmem:[#allocation2 + $0x1b0] sm:$0xff] %v937
    %1040 = vst [vmem:[#allocation2 + $0x1b8] sm:$0xff] %v939
    %1041 = vst [vmem:[#allocation2 + $0x1c0] sm:$0xff] %v602
    %1042 = vst [vmem:[#allocation2 + $0x1c8] sm:$0xff] %v604
    %1043 = vst [vmem:[#allocation2 + $0x1d0] sm:$0xff] %v715
    %1044 = vst [vmem:[#allocation2 + $0x1d8] sm:$0xff] %v717
    %1045 = vst [vmem:[#allocation2 + $0x1e0] sm:$0xff] %v828
    %1046 = vst [vmem:[#allocation2 + $0x1e8] sm:$0xff] %v830
    %1047 = vst [vmem:[#allocation2 + $0x1f0] sm:$0xff] %v941
    %1048 = vst [vmem:[#allocation2 + $0x1f8] sm:$0xff] %v943
    %1049 = vst [vmem:[#allocation2 + $0x200] sm:$0xff] %v608
    %1050 = vst [vmem:[#allocation2 + $0x208] sm:$0xff] %v610
    %1051 = vst [vmem:[#allocation2 + $0x210] sm:$0xff] %v721
    %1052 = vst [vmem:[#allocation2 + $0x218] sm:$0xff] %v723
    %1053 = vst [vmem:[#allocation2 + $0x220] sm:$0xff] %v834
    %1054 = vst [vmem:[#allocation2 + $0x228] sm:$0xff] %v836
    %1055 = vst [vmem:[#allocation2 + $0x230] sm:$0xff] %v947
    %1056 = vst [vmem:[#allocation2 + $0x238] sm:$0xff] %v949
    %1057 = vst [vmem:[#allocation2 + $0x240] sm:$0xff] %v612
    %1058 = vst [vmem:[#allocation2 + $0x248] sm:$0xff] %v614
    %1059 = vst [vmem:[#allocation2 + $0x250] sm:$0xff] %v725
    %1060 = vst [vmem:[#allocation2 + $0x258] sm:$0xff] %v727
    %1061 = vst [vmem:[#allocation2 + $0x260] sm:$0xff] %v838
    %1062 = vst [vmem:[#allocation2 + $0x268] sm:$0xff] %v840
    %1063 = vst [vmem:[#allocation2 + $0x270] sm:$0xff] %v951
    %1064 = vst [vmem:[#allocation2 + $0x278] sm:$0xff] %v953
    %1065 = vst [vmem:[#allocation2 + $0x280] sm:$0xff] %v618
    %1066 = vst [vmem:[#allocation2 + $0x288] sm:$0xff] %v620
    %1067 = vst [vmem:[#allocation2 + $0x290] sm:$0xff] %v731
    %1068 = vst [vmem:[#allocation2 + $0x298] sm:$0xff] %v733
    %1069 = vst [vmem:[#allocation2 + $0x2a0] sm:$0xff] %v844
    %1070 = vst [vmem:[#allocation2 + $0x2a8] sm:$0xff] %v846
    %1071 = vst [vmem:[#allocation2 + $0x2b0] sm:$0xff] %v957
    %1072 = vst [vmem:[#allocation2 + $0x2b8] sm:$0xff] %v959
    %1073 = vst [vmem:[#allocation2 + $0x2c0] sm:$0xff] %v622
    %1074 = vst [vmem:[#allocation2 + $0x2c8] sm:$0xff] %v624
    %1075 = vst [vmem:[#allocation2 + $0x2d0] sm:$0xff] %v735
    %1076 = vst [vmem:[#allocation2 + $0x2d8] sm:$0xff] %v737
    %1077 = vst [vmem:[#allocation2 + $0x2e0] sm:$0xff] %v848
    %1078 = vst [vmem:[#allocation2 + $0x2e8] sm:$0xff] %v850
    %1079 = vst [vmem:[#allocation2 + $0x2f0] sm:$0xff] %v961
    %1080 = vst [vmem:[#allocation2 + $0x2f8] sm:$0xff] %v963
    %1081 = vst [vmem:[#allocation2 + $0x300] sm:$0xff] %v628
    %1082 = vst [vmem:[#allocation2 + $0x308] sm:$0xff] %v630
    %1083 = vst [vmem:[#allocation2 + $0x310] sm:$0xff] %v741
    %1084 = vst [vmem:[#allocation2 + $0x318] sm:$0xff] %v743
    %1085 = vst [vmem:[#allocation2 + $0x320] sm:$0xff] %v854
    %1086 = vst [vmem:[#allocation2 + $0x328] sm:$0xff] %v856
    %1087 = vst [vmem:[#allocation2 + $0x330] sm:$0xff] %v967
    %1088 = vst [vmem:[#allocation2 + $0x338] sm:$0xff] %v969
    %1089 = vst [vmem:[#allocation2 + $0x340] sm:$0xff] %v632
    %1090 = vst [vmem:[#allocation2 + $0x348] sm:$0xff] %v634
    %1091 = vst [vmem:[#allocation2 + $0x350] sm:$0xff] %v745
    %1092 = vst [vmem:[#allocation2 + $0x358] sm:$0xff] %v747
    %1093 = vst [vmem:[#allocation2 + $0x360] sm:$0xff] %v858
    %1094 = vst [vmem:[#allocation2 + $0x368] sm:$0xff] %v860
    %1095 = vst [vmem:[#allocation2 + $0x370] sm:$0xff] %v971
    %1096 = vst [vmem:[#allocation2 + $0x378] sm:$0xff] %v973
    %1097 = vst [vmem:[#allocation2 + $0x380] sm:$0xff] %v638
    %1098 = vst [vmem:[#allocation2 + $0x388] sm:$0xff] %v640
    %1099 = vst [vmem:[#allocation2 + $0x390] sm:$0xff] %v751
    %1100 = vst [vmem:[#allocation2 + $0x398] sm:$0xff] %v753
    %1101 = vst [vmem:[#allocation2 + $0x3a0] sm:$0xff] %v864
    %1102 = vst [vmem:[#allocation2 + $0x3a8] sm:$0xff] %v866
    %1103 = vst [vmem:[#allocation2 + $0x3b0] sm:$0xff] %v977
    %1104 = vst [vmem:[#allocation2 + $0x3b8] sm:$0xff] %v979
    %1105 = vst [vmem:[#allocation2 + $0x3c0] sm:$0xff] %v642
    %1106 = vst [vmem:[#allocation2 + $0x3c8] sm:$0xff] %v644
    %1107 = vst [vmem:[#allocation2 + $0x3d0] sm:$0xff] %v755
    %1108 = vst [vmem:[#allocation2 + $0x3d8] sm:$0xff] %v757
    %1109 = vst [vmem:[#allocation2 + $0x3e0] sm:$0xff] %v868
    %1110 = vst [vmem:[#allocation2 + $0x3e8] sm:$0xff] %v870
    %1111 = vst [vmem:[#allocation2 + $0x3f0] sm:$0xff] %v981
    %1112 = vst [vmem:[#allocation2 + $0x3f8] sm:$0xff] %v983
    %v1113 = vld [vmem:[%s2] sm:$0xff]
    %v1114 = vld [vmem:[%s2 + $0x8] sm:$0xff]
    %v1115 = vld [vmem:[#allocation10] sm:$0xff]
    %v1116 = vld [vmem:[#allocation10 + $0x8] sm:$0xff]
    %v1117 = vld [vmem:[#allocation10 + $0x10] sm:$0xff]
    %v1118 = vld [vmem:[#allocation10 + $0x18] sm:$0xff]
    %v1119 = vld [vmem:[#allocation10 + $0x20] sm:$0xff]
    %v1120 = vld [vmem:[#allocation10 + $0x28] sm:$0xff]
    %v1121 = vld [vmem:[#allocation10 + $0x30] sm:$0xff]
    %v1122 = vld [vmem:[#allocation10 + $0x38] sm:$0xff]
    %v1123 = vld [vmem:[#allocation10 + $0x40] sm:$0xff]
    %v1124 = vld [vmem:[#allocation10 + $0x48] sm:$0xff]
    %v1125 = vld [vmem:[#allocation10 + $0x50] sm:$0xff]
    %v1126 = vld [vmem:[#allocation10 + $0x58] sm:$0xff]
    %v1127 = vld [vmem:[#allocation10 + $0x60] sm:$0xff]
    %v1128 = vld [vmem:[#allocation10 + $0x68] sm:$0xff]
    %v1129 = vld [vmem:[#allocation10 + $0x70] sm:$0xff]
    %v1130 = vld [vmem:[#allocation10 + $0x78] sm:$0xff]
    %v1131 = vld [vmem:[#allocation10 + $0x80] sm:$0xff]
    %v1132 = vld [vmem:[#allocation10 + $0x88] sm:$0xff]
    %v1133 = vld [vmem:[#allocation10 + $0x90] sm:$0xff]
    %v1134 = vld [vmem:[#allocation10 + $0x98] sm:$0xff]
    %v1135 = vld [vmem:[#allocation10 + $0xa0] sm:$0xff]
    %v1136 = vld [vmem:[#allocation10 + $0xa8] sm:$0xff]
    %v1137 = vld [vmem:[#allocation10 + $0xb0] sm:$0xff]
    %v1138 = vld [vmem:[#allocation10 + $0xb8] sm:$0xff]
    %v1139 = vld [vmem:[#allocation10 + $0xc0] sm:$0xff]
    %v1140 = vld [vmem:[#allocation10 + $0xc8] sm:$0xff]
    %v1141 = vld [vmem:[#allocation10 + $0xd0] sm:$0xff]
    %v1142 = vld [vmem:[#allocation10 + $0xd8] sm:$0xff]
    %v1143 = vld [vmem:[#allocation10 + $0xe0] sm:$0xff]
    %v1144 = vld [vmem:[#allocation10 + $0xe8] sm:$0xff]
    %v1145 = vld [vmem:[#allocation10 + $0xf0] sm:$0xff]
    %v1146 = vld [vmem:[#allocation10 + $0xf8] sm:$0xff]
    %v1147 = vld [vmem:[#allocation11] sm:$0xff]
    %v1148 = vld [vmem:[#allocation11 + $0x8] sm:$0xff]
    %v1149 = vld [vmem:[#allocation11 + $0x10] sm:$0xff]
    %v1150 = vld [vmem:[#allocation11 + $0x18] sm:$0xff]
    %v1151 = vld [vmem:[#allocation11 + $0x20] sm:$0xff]
    %v1152 = vld [vmem:[#allocation11 + $0x28] sm:$0xff]
    %v1153 = vld [vmem:[#allocation11 + $0x30] sm:$0xff]
    %v1154 = vld [vmem:[#allocation11 + $0x38] sm:$0xff]
    %v1155 = vld [vmem:[#allocation11 + $0x40] sm:$0xff]
    %v1156 = vld [vmem:[#allocation11 + $0x48] sm:$0xff]
    %v1157 = vld [vmem:[#allocation11 + $0x50] sm:$0xff]
    %v1158 = vld [vmem:[#allocation11 + $0x58] sm:$0xff]
    %v1159 = vld [vmem:[#allocation11 + $0x60] sm:$0xff]
    %v1160 = vld [vmem:[#allocation11 + $0x68] sm:$0xff]
    %v1161 = vld [vmem:[#allocation11 + $0x70] sm:$0xff]
    %v1162 = vld [vmem:[#allocation11 + $0x78] sm:$0xff]
    %v1163 = vld [vmem:[#allocation11 + $0x80] sm:$0xff]
    %v1164 = vld [vmem:[#allocation11 + $0x88] sm:$0xff]
    %v1165 = vld [vmem:[#allocation11 + $0x90] sm:$0xff]
    %v1166 = vld [vmem:[#allocation11 + $0x98] sm:$0xff]
    %v1167 = vld [vmem:[#allocation11 + $0xa0] sm:$0xff]
    %v1168 = vld [vmem:[#allocation11 + $0xa8] sm:$0xff]
    %v1169 = vld [vmem:[#allocation11 + $0xb0] sm:$0xff]
    %v1170 = vld [vmem:[#allocation11 + $0xb8] sm:$0xff]
    %v1171 = vld [vmem:[#allocation11 + $0xc0] sm:$0xff]
    %v1172 = vld [vmem:[#allocation11 + $0xc8] sm:$0xff]
    %v1173 = vld [vmem:[#allocation11 + $0xd0] sm:$0xff]
    %v1174 = vld [vmem:[#allocation11 + $0xd8] sm:$0xff]
    %v1175 = vld [vmem:[#allocation11 + $0xe0] sm:$0xff]
    %v1176 = vld [vmem:[#allocation11 + $0xe8] sm:$0xff]
    %v1177 = vld [vmem:[#allocation11 + $0xf0] sm:$0xff]
    %v1178 = vld [vmem:[#allocation11 + $0xf8] sm:$0xff]
    %v1179 = vld [vmem:[%s5] sm:$0xf]
    %v1180 = vld [vmem:[%s7] sm:$0xf]
    %s1181 = sld [smem:[#allocation4]]
    // While loop
    $region46: #{tpu_custom_call.1} parent=1 // loop_pre_header
      _
    $region47: #{tpu_custom_call.1} parent=1 // loop_header
      %s1183 = sphi 0, %s1185
      %p1184 = scmp.ge.s32.totalorder %s1183, %s1181
      %v1188 = vphi 0.0, %v1552
      %v1189 = vphi 0.0, %v1553
      %v1190 = vphi 0.0, %v1554
      %v1191 = vphi 0.0, %v1555
      %v1192 = vphi 0.0, %v1914
      %v1193 = vphi 0.0, %v1915
      %v1194 = vphi 0.0, %v1916
      %v1195 = vphi 0.0, %v1917
    $region48: #{tpu_custom_call.1} parent=1 // loop_header_branch
      %1187 = sbr.rel (%p1184) target = $region52
    $region49: #{tpu_custom_call.1} parent=1 // loop_body
      %s1196 = smul.u32 %s1183, 16
      %s1197 = smul.addr %s1196, 8
      %s1198 = scalar_lea.vmem [#allocation2], %s1197
      %v1199 = vld [vmem:[%s1198] sm:$0xff]
      %v1200 = vld [vmem:[%s1198 + $0x8] sm:$0xff]
      %v1201 = vld [vmem:[%s1198 + $0x10] sm:$0xff]
      %v1202 = vld [vmem:[%s1198 + $0x18] sm:$0xff]
      %v1203 = vld [vmem:[%s1198 + $0x40] sm:$0xff]
      %v1204 = vld [vmem:[%s1198 + $0x48] sm:$0xff]
      %v1205 = vld [vmem:[%s1198 + $0x50] sm:$0xff]
      %v1206 = vld [vmem:[%s1198 + $0x58] sm:$0xff]
      %v1208 = vlaneseq
      %v1209 = vshrl.u32 %v1208, 7
      %v1210 = vsub.s32 0, %v1209
      %v1211 = vrot.slane %v1179, %v1210
      %v1212 = vlaneseq
      %v1213 = vshrl.u32 %v1212, 7
      %v1214 = vsub.s32 1, %v1213
      %v1215 = vrot.slane %v1179, %v1214
      %v1216 = vlaneseq
      %v1217 = vshrl.u32 %v1216, 7
      %v1218 = vsub.s32 2, %v1217
      %v1219 = vrot.slane %v1179, %v1218
      %v1220 = vlaneseq
      %v1221 = vshrl.u32 %v1220, 7
      %v1222 = vsub.s32 3, %v1221
      %v1223 = vrot.slane %v1179, %v1222
      %v1228 = vadd.f32 %v1199, %v1211
      %v1229 = vadd.f32 %v1200, %v1215
      %v1230 = vadd.f32 %v1201, %v1219
      %v1231 = vadd.f32 %v1202, %v1223
      %v1232 = vadd.f32 %v1203, %v1211
      %v1233 = vadd.f32 %v1204, %v1215
      %v1234 = vadd.f32 %v1205, %v1219
      %v1235 = vadd.f32 %v1206, %v1223
      %v1236 = vpack.c.bf16 %v1189, %v1188
      %v1269 = vunpack.c.l.b16 %v1115
      %v1270 = vunpack.c.h.b16 %v1115
      %v1271 = vunpack.c.l.b16 %v1116
      %v1272 = vunpack.c.h.b16 %v1116
      %v1273 = vunpack.c.l.b16 %v1117
      %v1274 = vunpack.c.h.b16 %v1117
      %v1275 = vunpack.c.l.b16 %v1118
      %v1276 = vunpack.c.h.b16 %v1118
      %v1277 = vunpack.c.l.b16 %v1119
      %v1278 = vunpack.c.h.b16 %v1119
      %v1279 = vunpack.c.l.b16 %v1120
      %v1280 = vunpack.c.h.b16 %v1120
      %v1281 = vunpack.c.l.b16 %v1121
      %v1282 = vunpack.c.h.b16 %v1121
      %v1283 = vunpack.c.l.b16 %v1122
      %v1284 = vunpack.c.h.b16 %v1122
      %v1285 = vunpack.c.l.b16 %v1123
      %v1286 = vunpack.c.h.b16 %v1123
      %v1287 = vunpack.c.l.b16 %v1124
      %v1288 = vunpack.c.h.b16 %v1124
      %v1289 = vunpack.c.l.b16 %v1125
      %v1290 = vunpack.c.h.b16 %v1125
      %v1291 = vunpack.c.l.b16 %v1126
      %v1292 = vunpack.c.h.b16 %v1126
      %v1293 = vunpack.c.l.b16 %v1127
      %v1294 = vunpack.c.h.b16 %v1127
      %v1295 = vunpack.c.l.b16 %v1128
      %v1296 = vunpack.c.h.b16 %v1128
      %v1297 = vunpack.c.l.b16 %v1129
      %v1298 = vunpack.c.h.b16 %v1129
      %v1299 = vunpack.c.l.b16 %v1130
      %v1300 = vunpack.c.h.b16 %v1130
      %v1301 = vunpack.c.l.b16 %v1131
      %v1302 = vunpack.c.h.b16 %v1131
      %v1303 = vunpack.c.l.b16 %v1132
      %v1304 = vunpack.c.h.b16 %v1132
      %v1305 = vunpack.c.l.b16 %v1133
      %v1306 = vunpack.c.h.b16 %v1133
      %v1307 = vunpack.c.l.b16 %v1134
      %v1308 = vunpack.c.h.b16 %v1134
      %v1309 = vunpack.c.l.b16 %v1135
      %v1310 = vunpack.c.h.b16 %v1135
      %v1311 = vunpack.c.l.b16 %v1136
      %v1312 = vunpack.c.h.b16 %v1136
      %v1313 = vunpack.c.l.b16 %v1137
      %v1314 = vunpack.c.h.b16 %v1137
      %v1315 = vunpack.c.l.b16 %v1138
      %v1316 = vunpack.c.h.b16 %v1138
      %v1317 = vunpack.c.l.b16 %v1139
      %v1318 = vunpack.c.h.b16 %v1139
      %v1319 = vunpack.c.l.b16 %v1140
      %v1320 = vunpack.c.h.b16 %v1140
      %v1321 = vunpack.c.l.b16 %v1141
      %v1322 = vunpack.c.h.b16 %v1141
      %v1323 = vunpack.c.l.b16 %v1142
      %v1324 = vunpack.c.h.b16 %v1142
      %v1325 = vunpack.c.l.b16 %v1143
      %v1326 = vunpack.c.h.b16 %v1143
      %v1327 = vunpack.c.l.b16 %v1144
      %v1328 = vunpack.c.h.b16 %v1144
      %v1329 = vunpack.c.l.b16 %v1145
      %v1330 = vunpack.c.h.b16 %v1145
      %v1331 = vunpack.c.l.b16 %v1146
      %v1332 = vunpack.c.h.b16 %v1146
      %v1333 = vpack.c.b16 %v1273, %v1269
      %v1334 = vpack.c.b16 %v1274, %v1270
      %v1335 = vpack.c.b16 %v1275, %v1271
      %v1336 = vpack.c.b16 %v1276, %v1272
      %v1337 = vpack.c.b16 %v1281, %v1277
      %v1338 = vpack.c.b16 %v1282, %v1278
      %v1339 = vpack.c.b16 %v1283, %v1279
      %v1340 = vpack.c.b16 %v1284, %v1280
      %v1341 = vpack.c.b16 %v1289, %v1285
      %v1342 = vpack.c.b16 %v1290, %v1286
      %v1343 = vpack.c.b16 %v1291, %v1287
      %v1344 = vpack.c.b16 %v1292, %v1288
      %v1345 = vpack.c.b16 %v1297, %v1293
      %v1346 = vpack.c.b16 %v1298, %v1294
      %v1347 = vpack.c.b16 %v1299, %v1295
      %v1348 = vpack.c.b16 %v1300, %v1296
      %v1349 = vpack.c.b16 %v1305, %v1301
      %v1350 = vpack.c.b16 %v1306, %v1302
      %v1351 = vpack.c.b16 %v1307, %v1303
      %v1352 = vpack.c.b16 %v1308, %v1304
      %v1353 = vpack.c.b16 %v1313, %v1309
      %v1354 = vpack.c.b16 %v1314, %v1310
      %v1355 = vpack.c.b16 %v1315, %v1311
      %v1356 = vpack.c.b16 %v1316, %v1312
      %v1357 = vpack.c.b16 %v1321, %v1317
      %v1358 = vpack.c.b16 %v1322, %v1318
      %v1359 = vpack.c.b16 %v1323, %v1319
      %v1360 = vpack.c.b16 %v1324, %v1320
      %v1361 = vpack.c.b16 %v1329, %v1325
      %v1362 = vpack.c.b16 %v1330, %v1326
      %v1363 = vpack.c.b16 %v1331, %v1327
      %v1364 = vpack.c.b16 %v1332, %v1328
      %1397 = vmatprep.subr.bf16.mxu0 %v1362
      %1398 = vmatpush1.bf16.msra.mxu0 %v1361
      %1399 = vmatprep.subr.bf16.mxu0 %v1358
      %1400 = vmatpush1.bf16.msra.mxu0 %v1357
      %1401 = vmatprep.subr.bf16.mxu0 %v1354
      %1402 = vmatpush1.bf16.msra.mxu0 %v1353
      %1403 = vmatprep.subr.bf16.mxu0 %v1350
      %1404 = vmatpush1.bf16.msra.mxu0 %v1349
      %1405 = vmatprep.subr.bf16.mxu0 %v1346
      %1406 = vmatpush1.bf16.msra.mxu0 %v1345
      %1407 = vmatprep.subr.bf16.mxu0 %v1342
      %1408 = vmatpush1.bf16.msra.mxu0 %v1341
      %1409 = vmatprep.subr.bf16.mxu0 %v1338
      %1410 = vmatpush1.bf16.msra.mxu0 %v1337
      %1411 = vmatprep.subr.bf16.mxu0 %v1334
      %1412 = vmatpush1.bf16.msra.mxu0 %v1333
      %1413 = vmatprep.subr.bf16.mxu0 0
      %1414 = vmatpush2.bf16.msra.mxu0 0
      %1415 = vmatprep.subr.bf16.mxu0 0
      %1416 = vmatpush2.bf16.msra.mxu0 0
      %1417 = vmatprep.subr.bf16.mxu0 0
      %1418 = vmatpush2.bf16.msra.mxu0 0
      %1419 = vmatprep.subr.bf16.mxu0 0
      %1420 = vmatpush2.bf16.msra.mxu0 0
      %1421 = vmatprep.subr.bf16.mxu0 0
      %1422 = vmatpush2.bf16.msra.mxu0 0
      %1423 = vmatprep.subr.bf16.mxu0 0
      %1424 = vmatpush2.bf16.msra.mxu0 0
      %1425 = vmatprep.subr.bf16.mxu0 0
      %1426 = vmatpush2.bf16.msra.mxu0 0
      %1427 = vmatprep.subr.bf16.mxu0 0
      %1428 = vmatpush2.bf16.msra.mxu0 0
      %1429 = vmatprep.mubr.bf16.mxu0 0
      %1430 = vmatmul.mubr.bf16.gmra.mxu0 %v1236
      %v1431 = vpop.f32.mrf.mxu0
      %v1432 = vadd.f32 0.0, %v1431
      %v1433 = vpop.f32.mrf.mxu0
      %v1434 = vadd.f32 0.0, %v1433
      %v1435 = vpop.f32.mrf.mxu0
      %v1436 = vadd.f32 0.0, %v1435
      %v1437 = vpop.f32.mrf.mxu0
      %v1438 = vadd.f32 0.0, %v1437
      %1439 = vdwg.mxu0
      %1440 = vmatprep.subr.bf16.mxu0 %v1364
      %1441 = vmatpush1.bf16.msra.mxu0 %v1363
      %1442 = vmatprep.subr.bf16.mxu0 %v1360
      %1443 = vmatpush1.bf16.msra.mxu0 %v1359
      %1444 = vmatprep.subr.bf16.mxu0 %v1356
      %1445 = vmatpush1.bf16.msra.mxu0 %v1355
      %1446 = vmatprep.subr.bf16.mxu0 %v1352
      %1447 = vmatpush1.bf16.msra.mxu0 %v1351
      %1448 = vmatprep.subr.bf16.mxu0 %v1348
      %1449 = vmatpush1.bf16.msra.mxu0 %v1347
      %1450 = vmatprep.subr.bf16.mxu0 %v1344
      %1451 = vmatpush1.bf16.msra.mxu0 %v1343
      %1452 = vmatprep.subr.bf16.mxu0 %v1340
      %1453 = vmatpush1.bf16.msra.mxu0 %v1339
      %1454 = vmatprep.subr.bf16.mxu0 %v1336
      %1455 = vmatpush1.bf16.msra.mxu0 %v1335
      %1456 = vmatprep.subr.bf16.mxu0 0
      %1457 = vmatpush2.bf16.msra.mxu0 0
      %1458 = vmatprep.subr.bf16.mxu0 0
      %1459 = vmatpush2.bf16.msra.mxu0 0
      %1460 = vmatprep.subr.bf16.mxu0 0
      %1461 = vmatpush2.bf16.msra.mxu0 0
      %1462 = vmatprep.subr.bf16.mxu0 0
      %1463 = vmatpush2.bf16.msra.mxu0 0
      %1464 = vmatprep.subr.bf16.mxu0 0
      %1465 = vmatpush2.bf16.msra.mxu0 0
      %1466 = vmatprep.subr.bf16.mxu0 0
      %1467 = vmatpush2.bf16.msra.mxu0 0
      %1468 = vmatprep.subr.bf16.mxu0 0
      %1469 = vmatpush2.bf16.msra.mxu0 0
      %1470 = vmatprep.subr.bf16.mxu0 0
      %1471 = vmatpush2.bf16.msra.mxu0 0
      %1472 = vmatprep.mubr.bf16.mxu0 0
      %1473 = vmatmul.mubr.bf16.gmra.mxu0 %v1236
      %v1474 = vpop.f32.mrf.mxu0
      %v1475 = vadd.f32 0.0, %v1474
      %v1476 = vpop.f32.mrf.mxu0
      %v1477 = vadd.f32 0.0, %v1476
      %v1478 = vpop.f32.mrf.mxu0
      %v1479 = vadd.f32 0.0, %v1478
      %v1480 = vpop.f32.mrf.mxu0
      %v1481 = vadd.f32 0.0, %v1480
      %1482 = vdwg.mxu0
      %v1483 = vadd.f32 %v1228, %v1432
      %v1484 = vadd.f32 %v1229, %v1434
      %v1485 = vadd.f32 %v1230, %v1475
      %v1486 = vadd.f32 %v1231, %v1477
      %v1487 = vadd.f32 %v1232, %v1436
      %v1488 = vadd.f32 %v1233, %v1438
      %v1489 = vadd.f32 %v1234, %v1479
      %v1490 = vadd.f32 %v1235, %v1481
      %v1491 = vxor.u32 %v1483, 2147483648
      %v1492 = vxor.u32 %v1487, 2147483648
      %v1493 = vmul.f32 %v1491, 1.442695
      %v1494 = vpow.pop %v1493
      %v1495 = vmul.f32 %v1492, 1.442695
      %v1496 = vpow.pop %v1495
      %v1497 = vadd.f32 %v1494, 1.0
      %v1498 = vadd.f32 %v1496, 1.0
      %v1499 = vrcp.pop %v1497
      %v1500 = vmul.f32 1.0, %v1499
      %v1501 = vrcp.pop %v1498
      %v1502 = vmul.f32 1.0, %v1501
      %v1503 = vxor.u32 %v1484, 2147483648
      %v1504 = vxor.u32 %v1488, 2147483648
      %v1505 = vmul.f32 %v1503, 1.442695
      %v1506 = vpow.pop %v1505
      %v1507 = vmul.f32 %v1504, 1.442695
      %v1508 = vpow.pop %v1507
      %v1509 = vadd.f32 %v1506, 1.0
      %v1510 = vadd.f32 %v1508, 1.0
      %v1511 = vrcp.pop %v1509
      %v1512 = vmul.f32 1.0, %v1511
      %v1513 = vrcp.pop %v1510
      %v1514 = vmul.f32 1.0, %v1513
      %v1515 = vtanh.pop %v1485
      %v1516 = vtanh.pop %v1489
      %v1517 = vxor.u32 %v1486, 2147483648
      %v1518 = vxor.u32 %v1490, 2147483648
      %v1519 = vmul.f32 %v1517, 1.442695
      %v1520 = vpow.pop %v1519
      %v1521 = vmul.f32 %v1518, 1.442695
      %v1522 = vpow.pop %v1521
      %v1523 = vadd.f32 %v1520, 1.0
      %v1524 = vadd.f32 %v1522, 1.0
      %v1525 = vrcp.pop %v1523
      %v1526 = vmul.f32 1.0, %v1525
      %v1527 = vrcp.pop %v1524
      %v1528 = vmul.f32 1.0, %v1527
      %v1529 = vmul.f32 %v1512, %v1190
      %v1530 = vmul.f32 %v1514, %v1191
      %v1531 = vmul.f32 %v1500, %v1515
      %v1532 = vmul.f32 %v1502, %v1516
      %v1533 = vadd.f32 %v1529, %v1531
      %v1534 = vadd.f32 %v1530, %v1532
      %v1535 = vtanh.pop %v1533
      %v1536 = vtanh.pop %v1534
      %v1537 = vmul.f32 %v1526, %v1535
      %v1538 = vmul.f32 %v1528, %v1536
      %v1539 = vstv %s1183
      %vm1540 = vcmp.gt.s32.totalorder %v1113, %v1539
      %vm1541 = vcmp.gt.s32.totalorder %v1114, %v1539
      %v1542 = vsel %vm1540, 1, 0
      %v1543 = vsel %vm1541, 1, 0
      %1544 = vset.pattern.permute.xlu0 0
      %1545 = vperm.xlu0 %1544, %v1542
      %v1546 = vpop.permute.xlu0 %1545
      %1547 = vset.pattern.permute.xlu0 0
      %1548 = vperm.xlu0 %1547, %v1543
      %v1549 = vpop.permute.xlu0 %1548
      %vm1550 = vcmp.eq.s32.totalorder %v1546, 1
      %vm1551 = vcmp.eq.s32.totalorder %v1549, 1
      %v1552 = vsel %vm1550, %v1537, %v1188
      %v1553 = vsel %vm1551, %v1538, %v1189
      %v1554 = vsel %vm1550, %v1533, %v1190
      %v1555 = vsel %vm1551, %v1534, %v1191
      %s1556 = ssub.s32 %s1181, 1
      %s1557 = ssub.s32 %s1556, %s1183
      %s1558 = smul.u32 %s1557, 16
      %s1559 = smul.addr %s1558, 8
      %s1560 = scalar_lea.vmem [#allocation2], %s1559
      %v1561 = vld [vmem:[%s1560 + $0x20] sm:$0xff]
      %v1562 = vld [vmem:[%s1560 + $0x28] sm:$0xff]
      %v1563 = vld [vmem:[%s1560 + $0x30] sm:$0xff]
      %v1564 = vld [vmem:[%s1560 + $0x38] sm:$0xff]
      %v1565 = vld [vmem:[%s1560 + $0x60] sm:$0xff]
      %v1566 = vld [vmem:[%s1560 + $0x68] sm:$0xff]
      %v1567 = vld [vmem:[%s1560 + $0x70] sm:$0xff]
      %v1568 = vld [vmem:[%s1560 + $0x78] sm:$0xff]
      %v1570 = vlaneseq
      %v1571 = vshrl.u32 %v1570, 7
      %v1572 = vsub.s32 0, %v1571
      %v1573 = vrot.slane %v1180, %v1572
      %v1574 = vlaneseq
      %v1575 = vshrl.u32 %v1574, 7
      %v1576 = vsub.s32 1, %v1575
      %v1577 = vrot.slane %v1180, %v1576
      %v1578 = vlaneseq
      %v1579 = vshrl.u32 %v1578, 7
      %v1580 = vsub.s32 2, %v1579
      %v1581 = vrot.slane %v1180, %v1580
      %v1582 = vlaneseq
      %v1583 = vshrl.u32 %v1582, 7
      %v1584 = vsub.s32 3, %v1583
      %v1585 = vrot.slane %v1180, %v1584
      %v1590 = vadd.f32 %v1561, %v1573
      %v1591 = vadd.f32 %v1562, %v1577
      %v1592 = vadd.f32 %v1563, %v1581
      %v1593 = vadd.f32 %v1564, %v1585
      %v1594 = vadd.f32 %v1565, %v1573
      %v1595 = vadd.f32 %v1566, %v1577
      %v1596 = vadd.f32 %v1567, %v1581
      %v1597 = vadd.f32 %v1568, %v1585
      %v1598 = vpack.c.bf16 %v1193, %v1192
      %v1631 = vunpack.c.l.b16 %v1147
      %v1632 = vunpack.c.h.b16 %v1147
      %v1633 = vunpack.c.l.b16 %v1148
      %v1634 = vunpack.c.h.b16 %v1148
      %v1635 = vunpack.c.l.b16 %v1149
      %v1636 = vunpack.c.h.b16 %v1149
      %v1637 = vunpack.c.l.b16 %v1150
      %v1638 = vunpack.c.h.b16 %v1150
      %v1639 = vunpack.c.l.b16 %v1151
      %v1640 = vunpack.c.h.b16 %v1151
      %v1641 = vunpack.c.l.b16 %v1152
      %v1642 = vunpack.c.h.b16 %v1152
      %v1643 = vunpack.c.l.b16 %v1153
      %v1644 = vunpack.c.h.b16 %v1153
      %v1645 = vunpack.c.l.b16 %v1154
      %v1646 = vunpack.c.h.b16 %v1154
      %v1647 = vunpack.c.l.b16 %v1155
      %v1648 = vunpack.c.h.b16 %v1155
      %v1649 = vunpack.c.l.b16 %v1156
      %v1650 = vunpack.c.h.b16 %v1156
      %v1651 = vunpack.c.l.b16 %v1157
      %v1652 = vunpack.c.h.b16 %v1157
      %v1653 = vunpack.c.l.b16 %v1158
      %v1654 = vunpack.c.h.b16 %v1158
      %v1655 = vunpack.c.l.b16 %v1159
      %v1656 = vunpack.c.h.b16 %v1159
      %v1657 = vunpack.c.l.b16 %v1160
      %v1658 = vunpack.c.h.b16 %v1160
      %v1659 = vunpack.c.l.b16 %v1161
      %v1660 = vunpack.c.h.b16 %v1161
      %v1661 = vunpack.c.l.b16 %v1162
      %v1662 = vunpack.c.h.b16 %v1162
      %v1663 = vunpack.c.l.b16 %v1163
      %v1664 = vunpack.c.h.b16 %v1163
      %v1665 = vunpack.c.l.b16 %v1164
      %v1666 = vunpack.c.h.b16 %v1164
      %v1667 = vunpack.c.l.b16 %v1165
      %v1668 = vunpack.c.h.b16 %v1165
      %v1669 = vunpack.c.l.b16 %v1166
      %v1670 = vunpack.c.h.b16 %v1166
      %v1671 = vunpack.c.l.b16 %v1167
      %v1672 = vunpack.c.h.b16 %v1167
      %v1673 = vunpack.c.l.b16 %v1168
      %v1674 = vunpack.c.h.b16 %v1168
      %v1675 = vunpack.c.l.b16 %v1169
      %v1676 = vunpack.c.h.b16 %v1169
      %v1677 = vunpack.c.l.b16 %v1170
      %v1678 = vunpack.c.h.b16 %v1170
      %v1679 = vunpack.c.l.b16 %v1171
      %v1680 = vunpack.c.h.b16 %v1171
      %v1681 = vunpack.c.l.b16 %v1172
      %v1682 = vunpack.c.h.b16 %v1172
      %v1683 = vunpack.c.l.b16 %v1173
      %v1684 = vunpack.c.h.b16 %v1173
      %v1685 = vunpack.c.l.b16 %v1174
      %v1686 = vunpack.c.h.b16 %v1174
      %v1687 = vunpack.c.l.b16 %v1175
      %v1688 = vunpack.c.h.b16 %v1175
      %v1689 = vunpack.c.l.b16 %v1176
      %v1690 = vunpack.c.h.b16 %v1176
      %v1691 = vunpack.c.l.b16 %v1177
      %v1692 = vunpack.c.h.b16 %v1177
      %v1693 = vunpack.c.l.b16 %v1178
      %v1694 = vunpack.c.h.b16 %v1178
      %v1695 = vpack.c.b16 %v1635, %v1631
      %v1696 = vpack.c.b16 %v1636, %v1632
      %v1697 = vpack.c.b16 %v1637, %v1633
      %v1698 = vpack.c.b16 %v1638, %v1634
      %v1699 = vpack.c.b16 %v1643, %v1639
      %v1700 = vpack.c.b16 %v1644, %v1640
      %v1701 = vpack.c.b16 %v1645, %v1641
      %v1702 = vpack.c.b16 %v1646, %v1642
      %v1703 = vpack.c.b16 %v1651, %v1647
      %v1704 = vpack.c.b16 %v1652, %v1648
      %v1705 = vpack.c.b16 %v1653, %v1649
      %v1706 = vpack.c.b16 %v1654, %v1650
      %v1707 = vpack.c.b16 %v1659, %v1655
      %v1708 = vpack.c.b16 %v1660, %v1656
      %v1709 = vpack.c.b16 %v1661, %v1657
      %v1710 = vpack.c.b16 %v1662, %v1658
      %v1711 = vpack.c.b16 %v1667, %v1663
      %v1712 = vpack.c.b16 %v1668, %v1664
      %v1713 = vpack.c.b16 %v1669, %v1665
      %v1714 = vpack.c.b16 %v1670, %v1666
      %v1715 = vpack.c.b16 %v1675, %v1671
      %v1716 = vpack.c.b16 %v1676, %v1672
      %v1717 = vpack.c.b16 %v1677, %v1673
      %v1718 = vpack.c.b16 %v1678, %v1674
      %v1719 = vpack.c.b16 %v1683, %v1679
      %v1720 = vpack.c.b16 %v1684, %v1680
      %v1721 = vpack.c.b16 %v1685, %v1681
      %v1722 = vpack.c.b16 %v1686, %v1682
      %v1723 = vpack.c.b16 %v1691, %v1687
      %v1724 = vpack.c.b16 %v1692, %v1688
      %v1725 = vpack.c.b16 %v1693, %v1689
      %v1726 = vpack.c.b16 %v1694, %v1690
      %1759 = vmatprep.subr.bf16.mxu0 %v1724
      %1760 = vmatpush1.bf16.msra.mxu0 %v1723
      %1761 = vmatprep.subr.bf16.mxu0 %v1720
      %1762 = vmatpush1.bf16.msra.mxu0 %v1719
      %1763 = vmatprep.subr.bf16.mxu0 %v1716
      %1764 = vmatpush1.bf16.msra.mxu0 %v1715
      %1765 = vmatprep.subr.bf16.mxu0 %v1712
      %1766 = vmatpush1.bf16.msra.mxu0 %v1711
      %1767 = vmatprep.subr.bf16.mxu0 %v1708
      %1768 = vmatpush1.bf16.msra.mxu0 %v1707
      %1769 = vmatprep.subr.bf16.mxu0 %v1704
      %1770 = vmatpush1.bf16.msra.mxu0 %v1703
      %1771 = vmatprep.subr.bf16.mxu0 %v1700
      %1772 = vmatpush1.bf16.msra.mxu0 %v1699
      %1773 = vmatprep.subr.bf16.mxu0 %v1696
      %1774 = vmatpush1.bf16.msra.mxu0 %v1695
      %1775 = vmatprep.subr.bf16.mxu0 0
      %1776 = vmatpush2.bf16.msra.mxu0 0
      %1777 = vmatprep.subr.bf16.mxu0 0
      %1778 = vmatpush2.bf16.msra.mxu0 0
      %1779 = vmatprep.subr.bf16.mxu0 0
      %1780 = vmatpush2.bf16.msra.mxu0 0
      %1781 = vmatprep.subr.bf16.mxu0 0
      %1782 = vmatpush2.bf16.msra.mxu0 0
      %1783 = vmatprep.subr.bf16.mxu0 0
      %1784 = vmatpush2.bf16.msra.mxu0 0
      %1785 = vmatprep.subr.bf16.mxu0 0
      %1786 = vmatpush2.bf16.msra.mxu0 0
      %1787 = vmatprep.subr.bf16.mxu0 0
      %1788 = vmatpush2.bf16.msra.mxu0 0
      %1789 = vmatprep.subr.bf16.mxu0 0
      %1790 = vmatpush2.bf16.msra.mxu0 0
      %1791 = vmatprep.mubr.bf16.mxu0 0
      %1792 = vmatmul.mubr.bf16.gmra.mxu0 %v1598
      %v1793 = vpop.f32.mrf.mxu0
      %v1794 = vadd.f32 0.0, %v1793
      %v1795 = vpop.f32.mrf.mxu0
      %v1796 = vadd.f32 0.0, %v1795
      %v1797 = vpop.f32.mrf.mxu0
      %v1798 = vadd.f32 0.0, %v1797
      %v1799 = vpop.f32.mrf.mxu0
      %v1800 = vadd.f32 0.0, %v1799
      %1801 = vdwg.mxu0
      %1802 = vmatprep.subr.bf16.mxu0 %v1726
      %1803 = vmatpush1.bf16.msra.mxu0 %v1725
      %1804 = vmatprep.subr.bf16.mxu0 %v1722
      %1805 = vmatpush1.bf16.msra.mxu0 %v1721
      %1806 = vmatprep.subr.bf16.mxu0 %v1718
      %1807 = vmatpush1.bf16.msra.mxu0 %v1717
      %1808 = vmatprep.subr.bf16.mxu0 %v1714
      %1809 = vmatpush1.bf16.msra.mxu0 %v1713
      %1810 = vmatprep.subr.bf16.mxu0 %v1710
      %1811 = vmatpush1.bf16.msra.mxu0 %v1709
      %1812 = vmatprep.subr.bf16.mxu0 %v1706
      %1813 = vmatpush1.bf16.msra.mxu0 %v1705
      %1814 = vmatprep.subr.bf16.mxu0 %v1702
      %1815 = vmatpush1.bf16.msra.mxu0 %v1701
      %1816 = vmatprep.subr.bf16.mxu0 %v1698
      %1817 = vmatpush1.bf16.msra.mxu0 %v1697
      %1818 = vmatprep.subr.bf16.mxu0 0
      %1819 = vmatpush2.bf16.msra.mxu0 0
      %1820 = vmatprep.subr.bf16.mxu0 0
      %1821 = vmatpush2.bf16.msra.mxu0 0
      %1822 = vmatprep.subr.bf16.mxu0 0
      %1823 = vmatpush2.bf16.msra.mxu0 0
      %1824 = vmatprep.subr.bf16.mxu0 0
      %1825 = vmatpush2.bf16.msra.mxu0 0
      %1826 = vmatprep.subr.bf16.mxu0 0
      %1827 = vmatpush2.bf16.msra.mxu0 0
      %1828 = vmatprep.subr.bf16.mxu0 0
      %1829 = vmatpush2.bf16.msra.mxu0 0
      %1830 = vmatprep.subr.bf16.mxu0 0
      %1831 = vmatpush2.bf16.msra.mxu0 0
      %1832 = vmatprep.subr.bf16.mxu0 0
      %1833 = vmatpush2.bf16.msra.mxu0 0
      %1834 = vmatprep.mubr.bf16.mxu0 0
      %1835 = vmatmul.mubr.bf16.gmra.mxu0 %v1598
      %v1836 = vpop.f32.mrf.mxu0
      %v1837 = vadd.f32 0.0, %v1836
      %v1838 = vpop.f32.mrf.mxu0
      %v1839 = vadd.f32 0.0, %v1838
      %v1840 = vpop.f32.mrf.mxu0
      %v1841 = vadd.f32 0.0, %v1840
      %v1842 = vpop.f32.mrf.mxu0
      %v1843 = vadd.f32 0.0, %v1842
      %1844 = vdwg.mxu0
      %v1845 = vadd.f32 %v1590, %v1794
      %v1846 = vadd.f32 %v1591, %v1796
      %v1847 = vadd.f32 %v1592, %v1837
      %v1848 = vadd.f32 %v1593, %v1839
      %v1849 = vadd.f32 %v1594, %v1798
      %v1850 = vadd.f32 %v1595, %v1800
      %v1851 = vadd.f32 %v1596, %v1841
      %v1852 = vadd.f32 %v1597, %v1843
      %v1853 = vxor.u32 %v1845, 2147483648
      %v1854 = vxor.u32 %v1849, 2147483648
      %v1855 = vmul.f32 %v1853, 1.442695
      %v1856 = vpow.pop %v1855
      %v1857 = vmul.f32 %v1854, 1.442695
      %v1858 = vpow.pop %v1857
      %v1859 = vadd.f32 %v1856, 1.0
      %v1860 = vadd.f32 %v1858, 1.0
      %v1861 = vrcp.pop %v1859
      %v1862 = vmul.f32 1.0, %v1861
      %v1863 = vrcp.pop %v1860
      %v1864 = vmul.f32 1.0, %v1863
      %v1865 = vxor.u32 %v1846, 2147483648
      %v1866 = vxor.u32 %v1850, 2147483648
      %v1867 = vmul.f32 %v1865, 1.442695
      %v1868 = vpow.pop %v1867
      %v1869 = vmul.f32 %v1866, 1.442695
      %v1870 = vpow.pop %v1869
      %v1871 = vadd.f32 %v1868, 1.0
      %v1872 = vadd.f32 %v1870, 1.0
      %v1873 = vrcp.pop %v1871
      %v1874 = vmul.f32 1.0, %v1873
      %v1875 = vrcp.pop %v1872
      %v1876 = vmul.f32 1.0, %v1875
      %v1877 = vtanh.pop %v1847
      %v1878 = vtanh.pop %v1851
      %v1879 = vxor.u32 %v1848, 2147483648
      %v1880 = vxor.u32 %v1852, 2147483648
      %v1881 = vmul.f32 %v1879, 1.442695
      %v1882 = vpow.pop %v1881
      %v1883 = vmul.f32 %v1880, 1.442695
      %v1884 = vpow.pop %v1883
      %v1885 = vadd.f32 %v1882, 1.0
      %v1886 = vadd.f32 %v1884, 1.0
      %v1887 = vrcp.pop %v1885
      %v1888 = vmul.f32 1.0, %v1887
      %v1889 = vrcp.pop %v1886
      %v1890 = vmul.f32 1.0, %v1889
      %v1891 = vmul.f32 %v1874, %v1194
      %v1892 = vmul.f32 %v1876, %v1195
      %v1893 = vmul.f32 %v1862, %v1877
      %v1894 = vmul.f32 %v1864, %v1878
      %v1895 = vadd.f32 %v1891, %v1893
      %v1896 = vadd.f32 %v1892, %v1894
      %v1897 = vtanh.pop %v1895
      %v1898 = vtanh.pop %v1896
      %v1899 = vmul.f32 %v1888, %v1897
      %v1900 = vmul.f32 %v1890, %v1898
      %v1901 = vstv %s1557
      %vm1902 = vcmp.gt.s32.totalorder %v1113, %v1901
      %vm1903 = vcmp.gt.s32.totalorder %v1114, %v1901
      %v1904 = vsel %vm1902, 1, 0
      %v1905 = vsel %vm1903, 1, 0
      %1906 = vset.pattern.permute.xlu0 0
      %1907 = vperm.xlu0 %1906, %v1904
      %v1908 = vpop.permute.xlu0 %1907
      %1909 = vset.pattern.permute.xlu0 0
      %1910 = vperm.xlu0 %1909, %v1905
      %v1911 = vpop.permute.xlu0 %1910
      %vm1912 = vcmp.eq.s32.totalorder %v1908, 1
      %vm1913 = vcmp.eq.s32.totalorder %v1911, 1
      %v1914 = vsel %vm1912, %v1899, %v1192
      %v1915 = vsel %vm1913, %v1900, %v1193
      %v1916 = vsel %vm1912, %v1895, %v1194
      %v1917 = vsel %vm1913, %v1896, %v1195
    $region50: #{tpu_custom_call.1} parent=1 // loop_footer
      %s1185 = sadd.s32 %s1183, 1
    $region51: #{tpu_custom_call.1} parent=1 // loop_footer_branch
      %1182 = sbr.rel target = $region47
    $region52: #{tpu_custom_call.1} parent=1 // loop_exit
      _
    %1918 = vst [vmem:[#allocation13] sm:$0xff] %v1188
    %1919 = vst [vmem:[#allocation13 + $0x10] sm:$0xff] %v1189
    %1920 = vst [vmem:[#allocation13 + $0x8] sm:$0xff] %v1192
    %1921 = vst [vmem:[#allocation13 + $0x18] sm:$0xff] %v1193
    // Predicated region
    $region53: #{tpu_custom_call.1} parent=1 // pred_check
      _
    $region54: #{tpu_custom_call.1} parent=1 // pred_check_branch
      %1923 = sbr.rel (0) target = $region56
    $region55: #{tpu_custom_call.1} parent=1 // pred_region
      %s1925 = ssub.s32 512, 512
      %1926 = vsyncadd [#allocation7], %s1925
      %s1927 = sshll.u32 [#allocation13], 4
      %s1928 = int_to_ptr.vmem [resolvable:$true] %s1927
      %1933 = dma.vmem_to_hbm [thread:$0]  %s1928, 512, %s8, [#allocation7], 256, 256, 16
    $region56: #{tpu_custom_call.1} parent=1 // pred_fallthru
      _
    // Predicated region
    $region57: #{tpu_custom_call.1} parent=1 // pred_check
      _
    $region58: #{tpu_custom_call.1} parent=1 // pred_check_branch
      %1935 = sbr.rel (0) target = $region60
    $region59: #{tpu_custom_call.1} parent=1 // pred_region
      %1936 = dma.done [#allocation7], 512
    $region60: #{tpu_custom_call.1} parent=1 // pred_fallthru
      _
    %1937 = vsyncpa [#allocation6], 1
    %1938 = vsyncpa [#allocation9], 1
    %1939 = vsyncpa [#allocation12], 1
    %1940 = vsyncpa [#allocation7], 1

</llo_original>
